<compile_context>
chip_gen: v7x
topology: tpu7x:2x2x1
jax: 0.10.0
libtpu: 0.0.40
codegen_flags: <defaults>
</compile_context>

<pallas_src>
import jax
import jax.numpy as jnp
from jax import lax
from jax.experimental import pallas as pl
from jax.experimental.pallas import tpu as pltpu


# ----------------------------------------------------------------------------
# Fused Conv1d(k=1) + BN(eval, folded) + ReLU kernel.
# ----------------------------------------------------------------------------
def _linear1_kernel(x_ref, w_ref, shift_ref, o_ref):
    # x_ref:     (Bb, C_in, TN)   input tile, N on lanes
    # w_ref:     (C_out, C_in)    conv weight with BN scale already folded in
    # shift_ref: (C_out, 1)       folded BN shift = bias*s + beta - mean*s
    # o_ref:     (Bb, C_out, TN)  output tile
    w = w_ref[...]
    shift = shift_ref[...]
    # Short unrolled loop over the (static, small) block-batch axis; each
    # iteration is one MXU matmul + VPU add/ReLU + one dense store.
    for b in range(x_ref.shape[0]):
        acc = jnp.dot(w, x_ref[b],
                      preferred_element_type=jnp.float32,
                      precision=lax.Precision.HIGHEST)        # (C_out, TN)
        o_ref[b] = jnp.maximum(acc + shift, 0.0).astype(o_ref.dtype)


def linear1layer_pallas(x, weight, scale, shift, *, tn_max=32768, bb_max=8,
                        tile_vmem_budget=12 * 1024 * 1024):
    """x: (B, C_in, N) f32, weight: (C_out, C_in), scale/shift: (C_out,).

    Returns relu((scale[:,None]*weight) @ x + shift)  ==
            relu(BN_eval(weight @ x + bias))  with shape (B, C_out, N).
    """
    B, C_in, N = x.shape
    C_out = weight.shape[0]

    # Fold BN scale into the conv weight (tiny (C_out, C_in) op, done once).
    w_folded = weight.astype(jnp.float32) * scale.reshape(C_out, 1).astype(jnp.float32)
    shift2 = shift.reshape(C_out, 1).astype(jnp.float32)

    elem = x.dtype.itemsize
    bytes_per_lane = (C_in + C_out) * elem          # in + out bytes per lane column
    # Largest lane tile (multiple of 128) whose double-buffered in+out tiles
    # fit the VMEM budget.
    lanes_cap = max(128, (tile_vmem_budget // (2 * bytes_per_lane)) // 128 * 128)

    if N <= min(tn_max, lanes_cap):
        # One lane tile covers all of N (full-dim block: no 128-divisibility
        # requirement).  Amortize the per-step overhead over batch instead.
        tn = N
        per_batch = 2 * bytes_per_lane * tn
        bb_cap = int(max(1, min(bb_max, B, tile_vmem_budget // max(per_batch, 1))))
        bb = 1
        for cand in range(bb_cap, 0, -1):
            if B % cand == 0:
                bb = cand
                break
    else:
        # Large N: big fixed lane tiles + ragged grid (Pallas pads the last
        # partial block; out-of-range stores are dropped).
        tn = min(tn_max, lanes_cap)
        bb = 1

    grid = (B // bb, pl.cdiv(N, tn))

    # Scoped-VMEM limit: enough for the double-buffered tiles + resident
    # weight/shift, raised above v5e's 16 MiB default, capped well below
    # v7x's 64 MiB physical VMEM.
    est_bytes = 2 * bb * bytes_per_lane * tn + 2 * (C_out * C_in + C_out) * 4
    vmem_limit = int(min(48 * 1024 * 1024, max(32 * 1024 * 1024, 2 * est_bytes)))

    return pl.pallas_call(
        _linear1_kernel,
        out_shape=jax.ShapeDtypeStruct((B, C_out, N), x.dtype),
        grid=grid,
        in_specs=[
            pl.BlockSpec((bb, C_in, tn), lambda b, n: (b, 0, n)),
            pl.BlockSpec((C_out, C_in), lambda b, n: (0, 0)),
            pl.BlockSpec((C_out, 1), lambda b, n: (0, 0)),
        ],
        out_specs=pl.BlockSpec((bb, C_out, tn), lambda b, n: (b, 0, n)),
        compiler_params=pltpu.CompilerParams(
            dimension_semantics=("parallel", "parallel"),
            vmem_limit_bytes=vmem_limit),
    )(x, w_folded, shift2)


# ----------------------------------------------------------------------------
# Module wrapper mirroring Model/point_pn.py::Linear1Layer.
# ----------------------------------------------------------------------------
class Linear1Layer:
    """Conv1d(in, out, k=1, bias) -> BatchNorm1d(out) -> ReLU.

    BatchNorm is applied in eval mode (running statistics) and folded into a
    per-channel scale/shift so the whole forward is one fused Pallas kernel.
    """
    # TODO(synk): training-mode BatchNorm1d (batch statistics + running-stat
    # updates) is not implemented; the kernel uses eval-mode running stats.

    def __init__(self, in_channels, out_channels, key, bias=True, eps=1e-5):
        kw, kb, kg, kbt, km, kv = jax.random.split(key, 6)
        bound = 1.0 / (in_channels ** 0.5)
        self.weight = jax.random.uniform(
            kw, (out_channels, in_channels), jnp.float32, -bound, bound)
        if bias:
            self.bias = jax.random.uniform(
                kb, (out_channels,), jnp.float32, -bound, bound)
        else:
            self.bias = jnp.zeros((out_channels,), jnp.float32)
        # BN parameters / running stats (randomized so the test is non-trivial).
        self.gamma = jax.random.uniform(kg, (out_channels,), jnp.float32, 0.5, 1.5)
        self.beta = 0.1 * jax.random.normal(kbt, (out_channels,), jnp.float32)
        self.running_mean = 0.1 * jax.random.normal(km, (out_channels,), jnp.float32)
        self.running_var = jax.random.uniform(
            kv, (out_channels,), jnp.float32, 0.5, 1.5)
        self.eps = eps

    def folded_affine(self):
        s = self.gamma * lax.rsqrt(self.running_var + self.eps)
        shift = self.bias * s + (self.beta - self.running_mean * s)
        return s, shift

    def __call__(self, x, **kwargs):
        scale, shift = self.folded_affine()
        return linear1layer_pallas(x, self.weight, scale, shift, **kwargs)


# ----------------------------------------------------------------------------
# Pure-JAX reference for verification.
# ----------------------------------------------------------------------------
def _linear1_ref(x, w, b, gamma, beta, mean, var, eps):
    y = jnp.einsum("oc,bcn->bon", w, x, precision=lax.Precision.HIGHEST)
    y = y + b[None, :, None]
    y = (y - mean[None, :, None]) * lax.rsqrt(var + eps)[None, :, None]
    y = y * gamma[None, :, None] + beta[None, :, None]
    return jnp.maximum(y, 0.0)


if __name__ == "__main__":
    key = jax.random.PRNGKey(0)
    k_params, k_x1, k_x2 = jax.random.split(key, 3)

    B, C_in, C_out, N = 2, 16, 32, 512
    module = Linear1Layer(C_in, C_out, k_params, bias=True)

    # Test 1: default tiling (single full-N tile, batch-blocked kernel path).
    x = jax.random.normal(k_x1, (B, C_in, N), jnp.float32)
    out = jax.block_until_ready(module(x))
    assert out.shape == (B, C_out, N)
    ref = _linear1_ref(x, module.weight, module.bias, module.gamma,
                       module.beta, module.running_mean, module.running_var,
                       module.eps)
    assert jnp.all(out >= 0.0)
    assert jnp.allclose(out, ref, rtol=1e-5, atol=1e-5), (
        float(jnp.max(jnp.abs(out - ref))))

    # Test 2: force the multi-tile ragged-grid path (small tn_max, N % tn != 0).
    B2, N2 = 3, 640
    x2 = jax.random.normal(k_x2, (B2, C_in, N2), jnp.float32)
    out2 = jax.block_until_ready(module(x2, tn_max=256))
    ref2 = _linear1_ref(x2, module.weight, module.bias, module.gamma,
                        module.beta, module.running_mean, module.running_var,
                        module.eps)
    assert out2.shape == (B2, C_out, N2)
    assert jnp.allclose(out2, ref2, rtol=1e-5, atol=1e-5), (
        float(jnp.max(jnp.abs(out2 - ref2))))

    print("KERNEL_OK")
</pallas_src>

<mosaic_0001>
module attributes {stable_mosaic.version = 11 : i64} {
  func.func @_linear1_kernel(%arg0: i32, %arg1: i32, %arg2: memref<2x16x512xf32, #tpu.memory_space<vmem>>, %arg3: memref<32x16xf32, #tpu.memory_space<vmem>>, %arg4: memref<32x1xf32, #tpu.memory_space<vmem>>, %arg5: memref<2x32x512xf32, #tpu.memory_space<vmem>>) attributes {dimension_semantics = [#tpu.dimension_semantics<parallel>, #tpu.dimension_semantics<parallel>], iteration_bounds = array<i64: 1, 1>, scalar_prefetch = 0 : i64, scratch_operands = 0 : i64, tpu.core_type = #tpu.core_type<tc>, window_params = [{transform_indices = @transform_0, window_bounds = array<i64: 2, 16, 512>}, {pipeline_mode = #tpu.pipeline_mode<synchronous>, transform_indices = @transform_1, window_bounds = array<i64: 32, 16>}, {pipeline_mode = #tpu.pipeline_mode<synchronous>, transform_indices = @transform_2, window_bounds = array<i64: 32, 1>}, {transform_indices = @transform_3, window_bounds = array<i64: 2, 32, 512>}]} {
    %c0 = arith.constant 0 : index
    %c0_0 = arith.constant 0 : index
    %0 = vector.load %arg3[%c0, %c0_0] : memref<32x16xf32, #tpu.memory_space<vmem>>, vector<32x16xf32>
    %c0_1 = arith.constant 0 : index
    %c0_2 = arith.constant 0 : index
    %1 = vector.load %arg4[%c0_1, %c0_2] : memref<32x1xf32, #tpu.memory_space<vmem>>, vector<32x1xf32>
    %c0_3 = arith.constant 0 : index
    %c0_4 = arith.constant 0 : index
    %c0_5 = arith.constant 0 : index
    %2 = vector.load %arg2[%c0_3, %c0_4, %c0_5] : memref<2x16x512xf32, #tpu.memory_space<vmem>>, vector<1x16x512xf32>
    %3 = vector.shape_cast %2 : vector<1x16x512xf32> to vector<16x512xf32>
    %cst = arith.constant dense<0.000000e+00> : vector<32x512xf32>
    %4 = tpu.matmul %0, %3, %cst {dimension_numbers = #tpu.dot_dimension_numbers<[1], [0], [0], [1], [0, 0, 1, 1], [], []>, precision = #tpu.contract_precision<fp32>} : vector<32x16xf32>, vector<16x512xf32>, vector<32x512xf32> -> vector<32x512xf32>
    %5 = vector.broadcast %1 : vector<32x1xf32> to vector<32x512xf32>
    %6 = arith.addf %4, %5 : vector<32x512xf32>
    %cst_6 = arith.constant 0.000000e+00 : f32
    %7 = vector.broadcast %cst_6 : f32 to vector<32x512xf32>
    %8 = arith.maximumf %6, %7 : vector<32x512xf32>
    %c0_7 = arith.constant 0 : index
    %c0_8 = arith.constant 0 : index
    %c0_9 = arith.constant 0 : index
    %9 = vector.load %arg5[%c0_7, %c0_8, %c0_9] : memref<2x32x512xf32, #tpu.memory_space<vmem>>, vector<1x32x512xf32>
    %10 = vector.shape_cast %9 : vector<1x32x512xf32> to vector<32x512xf32>
    %11 = vector.shape_cast %8 : vector<32x512xf32> to vector<1x32x512xf32>
    tpu.vector_store %arg5[%c0_7, %c0_8, %c0_9], %11 {strides = array<i32>} : memref<2x32x512xf32, #tpu.memory_space<vmem>>, vector<1x32x512xf32>,
    %c1 = arith.constant 1 : index
    %c0_10 = arith.constant 0 : index
    %c0_11 = arith.constant 0 : index
    %12 = vector.load %arg2[%c1, %c0_10, %c0_11] : memref<2x16x512xf32, #tpu.memory_space<vmem>>, vector<1x16x512xf32>
    %13 = vector.shape_cast %12 : vector<1x16x512xf32> to vector<16x512xf32>
    %cst_12 = arith.constant dense<0.000000e+00> : vector<32x512xf32>
    %14 = tpu.matmul %0, %13, %cst_12 {dimension_numbers = #tpu.dot_dimension_numbers<[1], [0], [0], [1], [0, 0, 1, 1], [], []>, precision = #tpu.contract_precision<fp32>} : vector<32x16xf32>, vector<16x512xf32>, vector<32x512xf32> -> vector<32x512xf32>
    %15 = vector.broadcast %1 : vector<32x1xf32> to vector<32x512xf32>
    %16 = arith.addf %14, %15 : vector<32x512xf32>
    %cst_13 = arith.constant 0.000000e+00 : f32
    %17 = vector.broadcast %cst_13 : f32 to vector<32x512xf32>
    %18 = arith.maximumf %16, %17 : vector<32x512xf32>
    %c1_14 = arith.constant 1 : index
    %c0_15 = arith.constant 0 : index
    %c0_16 = arith.constant 0 : index
    %19 = vector.load %arg5[%c1_14, %c0_15, %c0_16] : memref<2x32x512xf32, #tpu.memory_space<vmem>>, vector<1x32x512xf32>
    %20 = vector.shape_cast %19 : vector<1x32x512xf32> to vector<32x512xf32>
    %21 = vector.shape_cast %18 : vector<32x512xf32> to vector<1x32x512xf32>
    tpu.vector_store %arg5[%c1_14, %c0_15, %c0_16], %21 {strides = array<i32>} : memref<2x32x512xf32, #tpu.memory_space<vmem>>, vector<1x32x512xf32>,
    return
  }
  func.func @transform_0(%arg0: i32, %arg1: i32) -> (i32, i32, i32) {
    %c0_i32 = arith.constant 0 : i32
    %c0_i32_0 = arith.constant 0 : i32
    return %arg0, %c0_i32, %arg1 : i32, i32, i32
  }
  func.func @transform_1(%arg0: i32, %arg1: i32) -> (i32, i32) {
    %c0_i32 = arith.constant 0 : i32
    %c0_i32_0 = arith.constant 0 : i32
    %c0_i32_1 = arith.constant 0 : i32
    return %c0_i32, %c0_i32_0 : i32, i32
  }
  func.func @transform_2(%arg0: i32, %arg1: i32) -> (i32, i32) {
    %c0_i32 = arith.constant 0 : i32
    %c0_i32_0 = arith.constant 0 : i32
    %c0_i32_1 = arith.constant 0 : i32
    return %c0_i32, %c0_i32_0 : i32, i32
  }
  func.func @transform_3(%arg0: i32, %arg1: i32) -> (i32, i32, i32) {
    %c0_i32 = arith.constant 0 : i32
    %c0_i32_0 = arith.constant 0 : i32
    return %arg0, %c0_i32, %arg1 : i32, i32, i32
  }
}

</mosaic_0001>

<llo_original>
// kernel: tpu_custom_call.1
$region0: #{tpu_custom_call.1}
  #allocation0 [shape = 'u32[]', space=smem, size = 0x4, offset = 0x4, fixed_abs, tag = 'smem constant byte address 0x4 - core index']
  #allocation1 [shape = 'u32[144,128]{1,0:T(1,128)}', space=vmem, size = 0x12000, scoped, tag = 'internal scratch']
  %s0 = inlined_call_operand.hbm [shape: f32[2,16,512], index: 0, kind: input, shape index: {}]
  %s1 = inlined_call_operand.vmem [shape: f32[32,16], index: 1, kind: input, shape index: {}]
  %s2 = inlined_call_operand.vmem [shape: f32[32,1], index: 2, kind: input, shape index: {}]
  %s3 = inlined_call_operand.hbm [shape: f32[2,32,512], index: 3, kind: output, shape index: {}]
  %s4 = sld [smem:[#allocation0]]
  $region26: #{tpu_custom_call.1} parent=0
    _
  %s6 = ssub.s32 1, %s4
  %s7 = scalar_select 0, %s6, %s4
  $region1: #{tpu_custom_call.1} parent=0
    #allocation2 [shape = 'u8[65536]{0}', space=vmem, size = 0x10000, scoped, tag = 'input window, operand 0, single buffered']
    #allocation3 [shape = 's32[1]{0}', space=sflag, size = 0x4, scoped, tag = 'scoped memory for tpu_custom_call.1']
    #allocation4 [shape = 's32[1]{0}', space=sflag, size = 0x4, scoped, tag = 'scoped memory for tpu_custom_call.1']
    #allocation5 [shape = 'u8[131072]{0}', space=vmem, size = 0x20000, scoped, tag = 'output window, operand 0, single buffered']
    %8 = vsyncpa [#allocation3], 0
    %9 = vsyncpa [#allocation4], 0
    // Predicated region
    $region2: #{tpu_custom_call.1} parent=1 // pred_check
      _
    $region3: #{tpu_custom_call.1} parent=1 // pred_check_branch
      %11 = sbr.rel (0) target = $region5
    $region4: #{tpu_custom_call.1} parent=1 // pred_region
      %s13 = ssub.s32 2048, 2048
      %14 = vsyncadd [#allocation3], %s13
      %s15 = sshll.u32 [#allocation2], 4
      %s16 = int_to_ptr.vmem [resolvable:$true] %s15
      %21 = dma.hbm_to_vmem [thread:$0]  %s0, 2048, %s16, [#allocation3], 512, 512, 32
    $region5: #{tpu_custom_call.1} parent=1 // pred_fallthru
      _
    // Predicated region
    $region6: #{tpu_custom_call.1} parent=1 // pred_check
      _
    $region7: #{tpu_custom_call.1} parent=1 // pred_check_branch
      %23 = sbr.rel (0) target = $region9
    $region8: #{tpu_custom_call.1} parent=1 // pred_region
      _
    $region9: #{tpu_custom_call.1} parent=1 // pred_fallthru
      _
    // Predicated region
    $region10: #{tpu_custom_call.1} parent=1 // pred_check
      _
    $region11: #{tpu_custom_call.1} parent=1 // pred_check_branch
      %25 = sbr.rel (0) target = $region13
    $region12: #{tpu_custom_call.1} parent=1 // pred_region
      _
    $region13: #{tpu_custom_call.1} parent=1 // pred_fallthru
      _
    // Predicated region
    $region14: #{tpu_custom_call.1} parent=1 // pred_check
      _
    $region15: #{tpu_custom_call.1} parent=1 // pred_check_branch
      %27 = sbr.rel (0) target = $region17
    $region16: #{tpu_custom_call.1} parent=1 // pred_region
      %28 = dma.done [#allocation3], 2048
    $region17: #{tpu_custom_call.1} parent=1 // pred_fallthru
      _
    %v29 = vld [vmem:[%s1] sm:$0xff]
    %v30 = vld [vmem:[%s1 + $0x8] sm:$0xff]
    %v31 = vld [vmem:[%s1 + $0x10] sm:$0xff]
    %v32 = vld [vmem:[%s1 + $0x18] sm:$0xff]
    %v33 = vld [vmem:[%s2] sm:$0xff]
    %v34 = vld [vmem:[%s2 + $0x8] sm:$0xff]
    %v35 = vld [vmem:[%s2 + $0x10] sm:$0xff]
    %v36 = vld [vmem:[%s2 + $0x18] sm:$0xff]
    %v37 = vld [vmem:[#allocation2] sm:$0xff]
    %v38 = vld [vmem:[#allocation2 + $0x8] sm:$0xff]
    %v39 = vld [vmem:[#allocation2 + $0x10] sm:$0xff]
    %v40 = vld [vmem:[#allocation2 + $0x18] sm:$0xff]
    %v41 = vld [vmem:[#allocation2 + $0x20] sm:$0xff]
    %v42 = vld [vmem:[#allocation2 + $0x28] sm:$0xff]
    %v43 = vld [vmem:[#allocation2 + $0x30] sm:$0xff]
    %v44 = vld [vmem:[#allocation2 + $0x38] sm:$0xff]
    %46 = vset.pattern.permute.xlu0 0
    %47 = vperm.xlu0 %46, %v33
    %v48 = vpop.permute.xlu0 %47
    %51 = vset.pattern.permute.xlu0 0
    %52 = vperm.xlu0 %51, %v34
    %v53 = vpop.permute.xlu0 %52
    %56 = vset.pattern.permute.xlu0 0
    %57 = vperm.xlu0 %56, %v35
    %v58 = vpop.permute.xlu0 %57
    %61 = vset.pattern.permute.xlu0 0
    %62 = vperm.xlu0 %61, %v36
    %v63 = vpop.permute.xlu0 %62
    %vm65 = vcmask 130048
    %v67 = vsel %vm65, %v29, 0
    %v70 = vsel %vm65, %v30, 0
    %v73 = vsel %vm65, %v31, 0
    %v76 = vsel %vm65, %v32, 0
    %v78 = vand.u32 %v38, 4294901760
    %79 = vmatprep.subr.mxu0 %v78
    %v80 = vand.u32 %v37, 4294901760
    %81 = vmatpush1.msra.mxu0 %v80
    %v82 = vand.u32 %v42, 4294901760
    %83 = vmatprep.subr.mxu0 %v82
    %v84 = vand.u32 %v41, 4294901760
    %85 = vmatpush1.msra.mxu0 %v84
    %86 = vmatprep.subr.mxu0 0.0
    %87 = vmatpush1.msra.mxu0 0.0
    %88 = vmatprep.subr.mxu0 0.0
    %89 = vmatpush1.msra.mxu0 0.0
    %90 = vmatprep.subr.mxu0 0.0
    %91 = vmatpush1.msra.mxu0 0.0
    %92 = vmatprep.subr.mxu0 0.0
    %93 = vmatpush1.msra.mxu0 0.0
    %94 = vmatprep.subr.mxu0 0.0
    %95 = vmatpush1.msra.mxu0 0.0
    %96 = vmatprep.subr.mxu0 0.0
    %97 = vmatpush1.msra.mxu0 0.0
    %98 = vmatprep.subr.mxu0 0.0
    %99 = vmatpush1.msra.mxu0 0.0
    %100 = vmatprep.subr.mxu0 0.0
    %101 = vmatpush1.msra.mxu0 0.0
    %102 = vmatprep.subr.mxu0 0.0
    %103 = vmatpush1.msra.mxu0 0.0
    %104 = vmatprep.subr.mxu0 0.0
    %105 = vmatpush1.msra.mxu0 0.0
    %106 = vmatprep.subr.mxu0 0.0
    %107 = vmatpush1.msra.mxu0 0.0
    %108 = vmatprep.subr.mxu0 0.0
    %109 = vmatpush1.msra.mxu0 0.0
    %110 = vmatprep.subr.mxu0 0.0
    %111 = vmatpush1.msra.mxu0 0.0
    %112 = vmatprep.subr.mxu0 0.0
    %113 = vmatpush1.msra.mxu0 0.0
    %114 = vmatprep.subr.mxu0 0.0
    %115 = vmatpush1.msra.mxu0 0.0
    %116 = vmatprep.subr.mxu0 0.0
    %117 = vmatpush1.msra.mxu0 0.0
    %118 = vmatprep.subr.mxu0 0.0
    %119 = vmatpush1.msra.mxu0 0.0
    %120 = vmatprep.subr.mxu0 0.0
    %121 = vmatpush1.msra.mxu0 0.0
    %122 = vmatprep.subr.mxu0 0.0
    %123 = vmatpush1.msra.mxu0 0.0
    %124 = vmatprep.subr.mxu0 0.0
    %125 = vmatpush1.msra.mxu0 0.0
    %126 = vmatprep.subr.mxu0 0.0
    %127 = vmatpush1.msra.mxu0 0.0
    %128 = vmatprep.subr.mxu0 0.0
    %129 = vmatpush1.msra.mxu0 0.0
    %130 = vmatprep.subr.mxu0 0.0
    %131 = vmatpush1.msra.mxu0 0.0
    %132 = vmatprep.subr.mxu0 0.0
    %133 = vmatpush1.msra.mxu0 0.0
    %134 = vmatprep.subr.mxu0 0.0
    %135 = vmatpush1.msra.mxu0 0.0
    %136 = vmatprep.subr.mxu0 0.0
    %137 = vmatpush1.msra.mxu0 0.0
    %138 = vmatprep.subr.mxu0 0.0
    %139 = vmatpush1.msra.mxu0 0.0
    %140 = vmatprep.subr.mxu0 0.0
    %141 = vmatpush1.msra.mxu0 0.0
    %142 = vmatprep.subr.mxu0 0.0
    %143 = vmatpush1.msra.mxu0 0.0
    %144 = vmatprep.subr.mxu0 0.0
    %145 = vmatpush1.msra.mxu0 0.0
    %146 = vmatprep.mubr.f32.mxu0 0.0
    %v147 = vand.u32 %v67, 4294901760
    %v148 = vsub.f32 %v67, %v147
    %v149 = vand.u32 %v148, 4294901760
    %v150 = vsub.f32 %v148, %v149
    %v151 = vand.u32 %v150, 4294901760
    %152 = vmatmul.mubr.f32.gmra.mrb[0].mxu0 %v151
    %v153 = vpop.f32.mrb[0].mxu0
    %v154 = vadd.f32 %v48, %v153
    %v155 = vpop.f32.mrb[0].mxu0
    %v156 = vadd.f32 %v48, %v155
    %157 = vmatprep.mubr.f32.mxu0 0.0
    %v158 = vand.u32 %v70, 4294901760
    %v159 = vsub.f32 %v70, %v158
    %v160 = vand.u32 %v159, 4294901760
    %v161 = vsub.f32 %v159, %v160
    %v162 = vand.u32 %v161, 4294901760
    %163 = vmatmul.mubr.f32.gmra.mrb[0].mxu0 %v162
    %v164 = vpop.f32.mrb[0].mxu0
    %v165 = vadd.f32 %v53, %v164
    %v166 = vpop.f32.mrb[0].mxu0
    %v167 = vadd.f32 %v53, %v166
    %168 = vmatprep.mubr.f32.mxu0 0.0
    %v169 = vand.u32 %v73, 4294901760
    %v170 = vsub.f32 %v73, %v169
    %v171 = vand.u32 %v170, 4294901760
    %v172 = vsub.f32 %v170, %v171
    %v173 = vand.u32 %v172, 4294901760
    %174 = vmatmul.mubr.f32.gmra.mrb[0].mxu0 %v173
    %v175 = vpop.f32.mrb[0].mxu0
    %v176 = vadd.f32 %v58, %v175
    %v177 = vpop.f32.mrb[0].mxu0
    %v178 = vadd.f32 %v58, %v177
    %179 = vmatprep.mubr.f32.mxu0 0.0
    %v180 = vand.u32 %v76, 4294901760
    %v181 = vsub.f32 %v76, %v180
    %v182 = vand.u32 %v181, 4294901760
    %v183 = vsub.f32 %v181, %v182
    %v184 = vand.u32 %v183, 4294901760
    %185 = vmatmul.mubr.f32.gmra.mrb[0].mxu0 %v184
    %v186 = vpop.f32.mrb[0].mxu0
    %v187 = vadd.f32 %v63, %v186
    %v188 = vpop.f32.mrb[0].mxu0
    %v189 = vadd.f32 %v63, %v188
    %190 = vdwg.mxu0
    %v191 = vand.u32 %v38, 4294901760
    %v192 = vsub.f32 %v38, %v191
    %v193 = vand.u32 %v192, 4294901760
    %v194 = vsub.f32 %v192, %v193
    %v195 = vand.u32 %v194, 4294901760
    %196 = vmatprep.subr.mxu0 %v195
    %v197 = vand.u32 %v37, 4294901760
    %v198 = vsub.f32 %v37, %v197
    %v199 = vand.u32 %v198, 4294901760
    %v200 = vsub.f32 %v198, %v199
    %v201 = vand.u32 %v200, 4294901760
    %202 = vmatpush1.msra.mxu0 %v201
    %v203 = vand.u32 %v42, 4294901760
    %v204 = vsub.f32 %v42, %v203
    %v205 = vand.u32 %v204, 4294901760
    %v206 = vsub.f32 %v204, %v205
    %v207 = vand.u32 %v206, 4294901760
    %208 = vmatprep.subr.mxu0 %v207
    %v209 = vand.u32 %v41, 4294901760
    %v210 = vsub.f32 %v41, %v209
    %v211 = vand.u32 %v210, 4294901760
    %v212 = vsub.f32 %v210, %v211
    %v213 = vand.u32 %v212, 4294901760
    %214 = vmatpush1.msra.mxu0 %v213
    %215 = vmatprep.subr.mxu0 0.0
    %216 = vmatpush1.msra.mxu0 0.0
    %217 = vmatprep.subr.mxu0 0.0
    %218 = vmatpush1.msra.mxu0 0.0
    %219 = vmatprep.subr.mxu0 0.0
    %220 = vmatpush1.msra.mxu0 0.0
    %221 = vmatprep.subr.mxu0 0.0
    %222 = vmatpush1.msra.mxu0 0.0
    %223 = vmatprep.subr.mxu0 0.0
    %224 = vmatpush1.msra.mxu0 0.0
    %225 = vmatprep.subr.mxu0 0.0
    %226 = vmatpush1.msra.mxu0 0.0
    %227 = vmatprep.subr.mxu0 0.0
    %228 = vmatpush1.msra.mxu0 0.0
    %229 = vmatprep.subr.mxu0 0.0
    %230 = vmatpush1.msra.mxu0 0.0
    %231 = vmatprep.subr.mxu0 0.0
    %232 = vmatpush1.msra.mxu0 0.0
    %233 = vmatprep.subr.mxu0 0.0
    %234 = vmatpush1.msra.mxu0 0.0
    %235 = vmatprep.subr.mxu0 0.0
    %236 = vmatpush1.msra.mxu0 0.0
    %237 = vmatprep.subr.mxu0 0.0
    %238 = vmatpush1.msra.mxu0 0.0
    %239 = vmatprep.subr.mxu0 0.0
    %240 = vmatpush1.msra.mxu0 0.0
    %241 = vmatprep.subr.mxu0 0.0
    %242 = vmatpush1.msra.mxu0 0.0
    %243 = vmatprep.subr.mxu0 0.0
    %244 = vmatpush1.msra.mxu0 0.0
    %245 = vmatprep.subr.mxu0 0.0
    %246 = vmatpush1.msra.mxu0 0.0
    %247 = vmatprep.subr.mxu0 0.0
    %248 = vmatpush1.msra.mxu0 0.0
    %249 = vmatprep.subr.mxu0 0.0
    %250 = vmatpush1.msra.mxu0 0.0
    %251 = vmatprep.subr.mxu0 0.0
    %252 = vmatpush1.msra.mxu0 0.0
    %253 = vmatprep.subr.mxu0 0.0
    %254 = vmatpush1.msra.mxu0 0.0
    %255 = vmatprep.subr.mxu0 0.0
    %256 = vmatpush1.msra.mxu0 0.0
    %257 = vmatprep.subr.mxu0 0.0
    %258 = vmatpush1.msra.mxu0 0.0
    %259 = vmatprep.subr.mxu0 0.0
    %260 = vmatpush1.msra.mxu0 0.0
    %261 = vmatprep.subr.mxu0 0.0
    %262 = vmatpush1.msra.mxu0 0.0
    %263 = vmatprep.subr.mxu0 0.0
    %264 = vmatpush1.msra.mxu0 0.0
    %265 = vmatprep.subr.mxu0 0.0
    %266 = vmatpush1.msra.mxu0 0.0
    %267 = vmatprep.subr.mxu0 0.0
    %268 = vmatpush1.msra.mxu0 0.0
    %269 = vmatprep.subr.mxu0 0.0
    %270 = vmatpush1.msra.mxu0 0.0
    %271 = vmatprep.subr.mxu0 0.0
    %272 = vmatpush1.msra.mxu0 0.0
    %273 = vmatprep.subr.mxu0 0.0
    %274 = vmatpush1.msra.mxu0 0.0
    %275 = vmatprep.mubr.f32.mxu0 0.0
    %v276 = vand.u32 %v67, 4294901760
    %277 = vmatmul.mubr.f32.gmra.mrb[0].mxu0 %v276
    %v278 = vpop.f32.mrb[0].mxu0
    %v279 = vadd.f32 %v154, %v278
    %v280 = vpop.f32.mrb[0].mxu0
    %v281 = vadd.f32 %v156, %v280
    %282 = vmatprep.mubr.f32.mxu0 0.0
    %v283 = vand.u32 %v70, 4294901760
    %284 = vmatmul.mubr.f32.gmra.mrb[0].mxu0 %v283
    %v285 = vpop.f32.mrb[0].mxu0
    %v286 = vadd.f32 %v165, %v285
    %v287 = vpop.f32.mrb[0].mxu0
    %v288 = vadd.f32 %v167, %v287
    %289 = vmatprep.mubr.f32.mxu0 0.0
    %v290 = vand.u32 %v73, 4294901760
    %291 = vmatmul.mubr.f32.gmra.mrb[0].mxu0 %v290
    %v292 = vpop.f32.mrb[0].mxu0
    %v293 = vadd.f32 %v176, %v292
    %v294 = vpop.f32.mrb[0].mxu0
    %v295 = vadd.f32 %v178, %v294
    %296 = vmatprep.mubr.f32.mxu0 0.0
    %v297 = vand.u32 %v76, 4294901760
    %298 = vmatmul.mubr.f32.gmra.mrb[0].mxu0 %v297
    %v299 = vpop.f32.mrb[0].mxu0
    %v300 = vadd.f32 %v187, %v299
    %v301 = vpop.f32.mrb[0].mxu0
    %v302 = vadd.f32 %v189, %v301
    %303 = vdwg.mxu0
    %v304 = vand.u32 %v38, 4294901760
    %v305 = vsub.f32 %v38, %v304
    %306 = vmatprep.subr.mxu0 %v305
    %v307 = vand.u32 %v37, 4294901760
    %v308 = vsub.f32 %v37, %v307
    %309 = vmatpush1.msra.mxu0 %v308
    %v310 = vand.u32 %v42, 4294901760
    %v311 = vsub.f32 %v42, %v310
    %312 = vmatprep.subr.mxu0 %v311
    %v313 = vand.u32 %v41, 4294901760
    %v314 = vsub.f32 %v41, %v313
    %315 = vmatpush1.msra.mxu0 %v314
    %316 = vmatprep.subr.mxu0 0.0
    %317 = vmatpush1.msra.mxu0 0.0
    %318 = vmatprep.subr.mxu0 0.0
    %319 = vmatpush1.msra.mxu0 0.0
    %320 = vmatprep.subr.mxu0 0.0
    %321 = vmatpush1.msra.mxu0 0.0
    %322 = vmatprep.subr.mxu0 0.0
    %323 = vmatpush1.msra.mxu0 0.0
    %324 = vmatprep.subr.mxu0 0.0
    %325 = vmatpush1.msra.mxu0 0.0
    %326 = vmatprep.subr.mxu0 0.0
    %327 = vmatpush1.msra.mxu0 0.0
    %328 = vmatprep.subr.mxu0 0.0
    %329 = vmatpush1.msra.mxu0 0.0
    %330 = vmatprep.subr.mxu0 0.0
    %331 = vmatpush1.msra.mxu0 0.0
    %332 = vmatprep.subr.mxu0 0.0
    %333 = vmatpush1.msra.mxu0 0.0
    %334 = vmatprep.subr.mxu0 0.0
    %335 = vmatpush1.msra.mxu0 0.0
    %336 = vmatprep.subr.mxu0 0.0
    %337 = vmatpush1.msra.mxu0 0.0
    %338 = vmatprep.subr.mxu0 0.0
    %339 = vmatpush1.msra.mxu0 0.0
    %340 = vmatprep.subr.mxu0 0.0
    %341 = vmatpush1.msra.mxu0 0.0
    %342 = vmatprep.subr.mxu0 0.0
    %343 = vmatpush1.msra.mxu0 0.0
    %344 = vmatprep.subr.mxu0 0.0
    %345 = vmatpush1.msra.mxu0 0.0
    %346 = vmatprep.subr.mxu0 0.0
    %347 = vmatpush1.msra.mxu0 0.0
    %348 = vmatprep.subr.mxu0 0.0
    %349 = vmatpush1.msra.mxu0 0.0
    %350 = vmatprep.subr.mxu0 0.0
    %351 = vmatpush1.msra.mxu0 0.0
    %352 = vmatprep.subr.mxu0 0.0
    %353 = vmatpush1.msra.mxu0 0.0
    %354 = vmatprep.subr.mxu0 0.0
    %355 = vmatpush1.msra.mxu0 0.0
    %356 = vmatprep.subr.mxu0 0.0
    %357 = vmatpush1.msra.mxu0 0.0
    %358 = vmatprep.subr.mxu0 0.0
    %359 = vmatpush1.msra.mxu0 0.0
    %360 = vmatprep.subr.mxu0 0.0
    %361 = vmatpush1.msra.mxu0 0.0
    %362 = vmatprep.subr.mxu0 0.0
    %363 = vmatpush1.msra.mxu0 0.0
    %364 = vmatprep.subr.mxu0 0.0
    %365 = vmatpush1.msra.mxu0 0.0
    %366 = vmatprep.subr.mxu0 0.0
    %367 = vmatpush1.msra.mxu0 0.0
    %368 = vmatprep.subr.mxu0 0.0
    %369 = vmatpush1.msra.mxu0 0.0
    %370 = vmatprep.subr.mxu0 0.0
    %371 = vmatpush1.msra.mxu0 0.0
    %372 = vmatprep.subr.mxu0 0.0
    %373 = vmatpush1.msra.mxu0 0.0
    %374 = vmatprep.subr.mxu0 0.0
    %375 = vmatpush1.msra.mxu0 0.0
    %376 = vmatprep.mubr.f32.mxu0 0.0
    %v377 = vand.u32 %v67, 4294901760
    %v378 = vsub.f32 %v67, %v377
    %379 = vmatmul.mubr.f32.gmra.mrb[0].mxu0 %v378
    %v380 = vpop.f32.mrb[0].mxu0
    %v381 = vadd.f32 %v279, %v380
    %v382 = vpop.f32.mrb[0].mxu0
    %v383 = vadd.f32 %v281, %v382
    %384 = vmatprep.mubr.f32.mxu0 0.0
    %v385 = vand.u32 %v70, 4294901760
    %v386 = vsub.f32 %v70, %v385
    %387 = vmatmul.mubr.f32.gmra.mrb[0].mxu0 %v386
    %v388 = vpop.f32.mrb[0].mxu0
    %v389 = vadd.f32 %v286, %v388
    %v390 = vpop.f32.mrb[0].mxu0
    %v391 = vadd.f32 %v288, %v390
    %392 = vmatprep.mubr.f32.mxu0 0.0
    %v393 = vand.u32 %v73, 4294901760
    %v394 = vsub.f32 %v73, %v393
    %395 = vmatmul.mubr.f32.gmra.mrb[0].mxu0 %v394
    %v396 = vpop.f32.mrb[0].mxu0
    %v397 = vadd.f32 %v293, %v396
    %v398 = vpop.f32.mrb[0].mxu0
    %v399 = vadd.f32 %v295, %v398
    %400 = vmatprep.mubr.f32.mxu0 0.0
    %v401 = vand.u32 %v76, 4294901760
    %v402 = vsub.f32 %v76, %v401
    %403 = vmatmul.mubr.f32.gmra.mrb[0].mxu0 %v402
    %v404 = vpop.f32.mrb[0].mxu0
    %v405 = vadd.f32 %v300, %v404
    %v406 = vpop.f32.mrb[0].mxu0
    %v407 = vadd.f32 %v302, %v406
    %408 = vdwg.mxu0
    %v409 = vand.u32 %v38, 4294901760
    %410 = vmatprep.subr.mxu0 %v409
    %v411 = vand.u32 %v37, 4294901760
    %412 = vmatpush1.msra.mxu0 %v411
    %v413 = vand.u32 %v42, 4294901760
    %414 = vmatprep.subr.mxu0 %v413
    %v415 = vand.u32 %v41, 4294901760
    %416 = vmatpush1.msra.mxu0 %v415
    %417 = vmatprep.subr.mxu0 0.0
    %418 = vmatpush1.msra.mxu0 0.0
    %419 = vmatprep.subr.mxu0 0.0
    %420 = vmatpush1.msra.mxu0 0.0
    %421 = vmatprep.subr.mxu0 0.0
    %422 = vmatpush1.msra.mxu0 0.0
    %423 = vmatprep.subr.mxu0 0.0
    %424 = vmatpush1.msra.mxu0 0.0
    %425 = vmatprep.subr.mxu0 0.0
    %426 = vmatpush1.msra.mxu0 0.0
    %427 = vmatprep.subr.mxu0 0.0
    %428 = vmatpush1.msra.mxu0 0.0
    %429 = vmatprep.subr.mxu0 0.0
    %430 = vmatpush1.msra.mxu0 0.0
    %431 = vmatprep.subr.mxu0 0.0
    %432 = vmatpush1.msra.mxu0 0.0
    %433 = vmatprep.subr.mxu0 0.0
    %434 = vmatpush1.msra.mxu0 0.0
    %435 = vmatprep.subr.mxu0 0.0
    %436 = vmatpush1.msra.mxu0 0.0
    %437 = vmatprep.subr.mxu0 0.0
    %438 = vmatpush1.msra.mxu0 0.0
    %439 = vmatprep.subr.mxu0 0.0
    %440 = vmatpush1.msra.mxu0 0.0
    %441 = vmatprep.subr.mxu0 0.0
    %442 = vmatpush1.msra.mxu0 0.0
    %443 = vmatprep.subr.mxu0 0.0
    %444 = vmatpush1.msra.mxu0 0.0
    %445 = vmatprep.subr.mxu0 0.0
    %446 = vmatpush1.msra.mxu0 0.0
    %447 = vmatprep.subr.mxu0 0.0
    %448 = vmatpush1.msra.mxu0 0.0
    %449 = vmatprep.subr.mxu0 0.0
    %450 = vmatpush1.msra.mxu0 0.0
    %451 = vmatprep.subr.mxu0 0.0
    %452 = vmatpush1.msra.mxu0 0.0
    %453 = vmatprep.subr.mxu0 0.0
    %454 = vmatpush1.msra.mxu0 0.0
    %455 = vmatprep.subr.mxu0 0.0
    %456 = vmatpush1.msra.mxu0 0.0
    %457 = vmatprep.subr.mxu0 0.0
    %458 = vmatpush1.msra.mxu0 0.0
    %459 = vmatprep.subr.mxu0 0.0
    %460 = vmatpush1.msra.mxu0 0.0
    %461 = vmatprep.subr.mxu0 0.0
    %462 = vmatpush1.msra.mxu0 0.0
    %463 = vmatprep.subr.mxu0 0.0
    %464 = vmatpush1.msra.mxu0 0.0
    %465 = vmatprep.subr.mxu0 0.0
    %466 = vmatpush1.msra.mxu0 0.0
    %467 = vmatprep.subr.mxu0 0.0
    %468 = vmatpush1.msra.mxu0 0.0
    %469 = vmatprep.subr.mxu0 0.0
    %470 = vmatpush1.msra.mxu0 0.0
    %471 = vmatprep.subr.mxu0 0.0
    %472 = vmatpush1.msra.mxu0 0.0
    %473 = vmatprep.subr.mxu0 0.0
    %474 = vmatpush1.msra.mxu0 0.0
    %475 = vmatprep.subr.mxu0 0.0
    %476 = vmatpush1.msra.mxu0 0.0
    %477 = vmatprep.mubr.f32.mxu0 0.0
    %v478 = vand.u32 %v67, 4294901760
    %v479 = vsub.f32 %v67, %v478
    %v480 = vand.u32 %v479, 4294901760
    %481 = vmatmul.mubr.f32.gmra.mrb[0].mxu0 %v480
    %v482 = vpop.f32.mrb[0].mxu0
    %v483 = vadd.f32 %v381, %v482
    %v484 = vpop.f32.mrb[0].mxu0
    %v485 = vadd.f32 %v383, %v484
    %486 = vmatprep.mubr.f32.mxu0 0.0
    %v487 = vand.u32 %v70, 4294901760
    %v488 = vsub.f32 %v70, %v487
    %v489 = vand.u32 %v488, 4294901760
    %490 = vmatmul.mubr.f32.gmra.mrb[0].mxu0 %v489
    %v491 = vpop.f32.mrb[0].mxu0
    %v492 = vadd.f32 %v389, %v491
    %v493 = vpop.f32.mrb[0].mxu0
    %v494 = vadd.f32 %v391, %v493
    %495 = vmatprep.mubr.f32.mxu0 0.0
    %v496 = vand.u32 %v73, 4294901760
    %v497 = vsub.f32 %v73, %v496
    %v498 = vand.u32 %v497, 4294901760
    %499 = vmatmul.mubr.f32.gmra.mrb[0].mxu0 %v498
    %v500 = vpop.f32.mrb[0].mxu0
    %v501 = vadd.f32 %v397, %v500
    %v502 = vpop.f32.mrb[0].mxu0
    %v503 = vadd.f32 %v399, %v502
    %504 = vmatprep.mubr.f32.mxu0 0.0
    %v505 = vand.u32 %v76, 4294901760
    %v506 = vsub.f32 %v76, %v505
    %v507 = vand.u32 %v506, 4294901760
    %508 = vmatmul.mubr.f32.gmra.mrb[0].mxu0 %v507
    %v509 = vpop.f32.mrb[0].mxu0
    %v510 = vadd.f32 %v405, %v509
    %v511 = vpop.f32.mrb[0].mxu0
    %v512 = vadd.f32 %v407, %v511
    %513 = vdwg.mxu0
    %v514 = vand.u32 %v38, 4294901760
    %v515 = vsub.f32 %v38, %v514
    %v516 = vand.u32 %v515, 4294901760
    %517 = vmatprep.subr.mxu0 %v516
    %v518 = vand.u32 %v37, 4294901760
    %v519 = vsub.f32 %v37, %v518
    %v520 = vand.u32 %v519, 4294901760
    %521 = vmatpush1.msra.mxu0 %v520
    %v522 = vand.u32 %v42, 4294901760
    %v523 = vsub.f32 %v42, %v522
    %v524 = vand.u32 %v523, 4294901760
    %525 = vmatprep.subr.mxu0 %v524
    %v526 = vand.u32 %v41, 4294901760
    %v527 = vsub.f32 %v41, %v526
    %v528 = vand.u32 %v527, 4294901760
    %529 = vmatpush1.msra.mxu0 %v528
    %530 = vmatprep.subr.mxu0 0.0
    %531 = vmatpush1.msra.mxu0 0.0
    %532 = vmatprep.subr.mxu0 0.0
    %533 = vmatpush1.msra.mxu0 0.0
    %534 = vmatprep.subr.mxu0 0.0
    %535 = vmatpush1.msra.mxu0 0.0
    %536 = vmatprep.subr.mxu0 0.0
    %537 = vmatpush1.msra.mxu0 0.0
    %538 = vmatprep.subr.mxu0 0.0
    %539 = vmatpush1.msra.mxu0 0.0
    %540 = vmatprep.subr.mxu0 0.0
    %541 = vmatpush1.msra.mxu0 0.0
    %542 = vmatprep.subr.mxu0 0.0
    %543 = vmatpush1.msra.mxu0 0.0
    %544 = vmatprep.subr.mxu0 0.0
    %545 = vmatpush1.msra.mxu0 0.0
    %546 = vmatprep.subr.mxu0 0.0
    %547 = vmatpush1.msra.mxu0 0.0
    %548 = vmatprep.subr.mxu0 0.0
    %549 = vmatpush1.msra.mxu0 0.0
    %550 = vmatprep.subr.mxu0 0.0
    %551 = vmatpush1.msra.mxu0 0.0
    %552 = vmatprep.subr.mxu0 0.0
    %553 = vmatpush1.msra.mxu0 0.0
    %554 = vmatprep.subr.mxu0 0.0
    %555 = vmatpush1.msra.mxu0 0.0
    %556 = vmatprep.subr.mxu0 0.0
    %557 = vmatpush1.msra.mxu0 0.0
    %558 = vmatprep.subr.mxu0 0.0
    %559 = vmatpush1.msra.mxu0 0.0
    %560 = vmatprep.subr.mxu0 0.0
    %561 = vmatpush1.msra.mxu0 0.0
    %562 = vmatprep.subr.mxu0 0.0
    %563 = vmatpush1.msra.mxu0 0.0
    %564 = vmatprep.subr.mxu0 0.0
    %565 = vmatpush1.msra.mxu0 0.0
    %566 = vmatprep.subr.mxu0 0.0
    %567 = vmatpush1.msra.mxu0 0.0
    %568 = vmatprep.subr.mxu0 0.0
    %569 = vmatpush1.msra.mxu0 0.0
    %570 = vmatprep.subr.mxu0 0.0
    %571 = vmatpush1.msra.mxu0 0.0
    %572 = vmatprep.subr.mxu0 0.0
    %573 = vmatpush1.msra.mxu0 0.0
    %574 = vmatprep.subr.mxu0 0.0
    %575 = vmatpush1.msra.mxu0 0.0
    %576 = vmatprep.subr.mxu0 0.0
    %577 = vmatpush1.msra.mxu0 0.0
    %578 = vmatprep.subr.mxu0 0.0
    %579 = vmatpush1.msra.mxu0 0.0
    %580 = vmatprep.subr.mxu0 0.0
    %581 = vmatpush1.msra.mxu0 0.0
    %582 = vmatprep.subr.mxu0 0.0
    %583 = vmatpush1.msra.mxu0 0.0
    %584 = vmatprep.subr.mxu0 0.0
    %585 = vmatpush1.msra.mxu0 0.0
    %586 = vmatprep.subr.mxu0 0.0
    %587 = vmatpush1.msra.mxu0 0.0
    %588 = vmatprep.subr.mxu0 0.0
    %589 = vmatpush1.msra.mxu0 0.0
    %590 = vmatprep.mubr.f32.mxu0 0.0
    %v591 = vand.u32 %v67, 4294901760
    %592 = vmatmul.mubr.f32.gmra.mrb[0].mxu0 %v591
    %v593 = vpop.f32.mrb[0].mxu0
    %v594 = vadd.f32 %v483, %v593
    %v595 = vpop.f32.mrb[0].mxu0
    %v596 = vadd.f32 %v485, %v595
    %597 = vmatprep.mubr.f32.mxu0 0.0
    %v598 = vand.u32 %v70, 4294901760
    %599 = vmatmul.mubr.f32.gmra.mrb[0].mxu0 %v598
    %v600 = vpop.f32.mrb[0].mxu0
    %v601 = vadd.f32 %v492, %v600
    %v602 = vpop.f32.mrb[0].mxu0
    %v603 = vadd.f32 %v494, %v602
    %604 = vmatprep.mubr.f32.mxu0 0.0
    %v605 = vand.u32 %v73, 4294901760
    %606 = vmatmul.mubr.f32.gmra.mrb[0].mxu0 %v605
    %v607 = vpop.f32.mrb[0].mxu0
    %v608 = vadd.f32 %v501, %v607
    %v609 = vpop.f32.mrb[0].mxu0
    %v610 = vadd.f32 %v503, %v609
    %611 = vmatprep.mubr.f32.mxu0 0.0
    %v612 = vand.u32 %v76, 4294901760
    %613 = vmatmul.mubr.f32.gmra.mrb[0].mxu0 %v612
    %v614 = vpop.f32.mrb[0].mxu0
    %v615 = vadd.f32 %v510, %v614
    %v616 = vpop.f32.mrb[0].mxu0
    %v617 = vadd.f32 %v512, %v616
    %618 = vdwg.mxu0
    %v619 = vand.u32 %v38, 4294901760
    %620 = vmatprep.subr.mxu0 %v619
    %v621 = vand.u32 %v37, 4294901760
    %622 = vmatpush1.msra.mxu0 %v621
    %v623 = vand.u32 %v42, 4294901760
    %624 = vmatprep.subr.mxu0 %v623
    %v625 = vand.u32 %v41, 4294901760
    %626 = vmatpush1.msra.mxu0 %v625
    %627 = vmatprep.subr.mxu0 0.0
    %628 = vmatpush1.msra.mxu0 0.0
    %629 = vmatprep.subr.mxu0 0.0
    %630 = vmatpush1.msra.mxu0 0.0
    %631 = vmatprep.subr.mxu0 0.0
    %632 = vmatpush1.msra.mxu0 0.0
    %633 = vmatprep.subr.mxu0 0.0
    %634 = vmatpush1.msra.mxu0 0.0
    %635 = vmatprep.subr.mxu0 0.0
    %636 = vmatpush1.msra.mxu0 0.0
    %637 = vmatprep.subr.mxu0 0.0
    %638 = vmatpush1.msra.mxu0 0.0
    %639 = vmatprep.subr.mxu0 0.0
    %640 = vmatpush1.msra.mxu0 0.0
    %641 = vmatprep.subr.mxu0 0.0
    %642 = vmatpush1.msra.mxu0 0.0
    %643 = vmatprep.subr.mxu0 0.0
    %644 = vmatpush1.msra.mxu0 0.0
    %645 = vmatprep.subr.mxu0 0.0
    %646 = vmatpush1.msra.mxu0 0.0
    %647 = vmatprep.subr.mxu0 0.0
    %648 = vmatpush1.msra.mxu0 0.0
    %649 = vmatprep.subr.mxu0 0.0
    %650 = vmatpush1.msra.mxu0 0.0
    %651 = vmatprep.subr.mxu0 0.0
    %652 = vmatpush1.msra.mxu0 0.0
    %653 = vmatprep.subr.mxu0 0.0
    %654 = vmatpush1.msra.mxu0 0.0
    %655 = vmatprep.subr.mxu0 0.0
    %656 = vmatpush1.msra.mxu0 0.0
    %657 = vmatprep.subr.mxu0 0.0
    %658 = vmatpush1.msra.mxu0 0.0
    %659 = vmatprep.subr.mxu0 0.0
    %660 = vmatpush1.msra.mxu0 0.0
    %661 = vmatprep.subr.mxu0 0.0
    %662 = vmatpush1.msra.mxu0 0.0
    %663 = vmatprep.subr.mxu0 0.0
    %664 = vmatpush1.msra.mxu0 0.0
    %665 = vmatprep.subr.mxu0 0.0
    %666 = vmatpush1.msra.mxu0 0.0
    %667 = vmatprep.subr.mxu0 0.0
    %668 = vmatpush1.msra.mxu0 0.0
    %669 = vmatprep.subr.mxu0 0.0
    %670 = vmatpush1.msra.mxu0 0.0
    %671 = vmatprep.subr.mxu0 0.0
    %672 = vmatpush1.msra.mxu0 0.0
    %673 = vmatprep.subr.mxu0 0.0
    %674 = vmatpush1.msra.mxu0 0.0
    %675 = vmatprep.subr.mxu0 0.0
    %676 = vmatpush1.msra.mxu0 0.0
    %677 = vmatprep.subr.mxu0 0.0
    %678 = vmatpush1.msra.mxu0 0.0
    %679 = vmatprep.subr.mxu0 0.0
    %680 = vmatpush1.msra.mxu0 0.0
    %681 = vmatprep.subr.mxu0 0.0
    %682 = vmatpush1.msra.mxu0 0.0
    %683 = vmatprep.subr.mxu0 0.0
    %684 = vmatpush1.msra.mxu0 0.0
    %685 = vmatprep.subr.mxu0 0.0
    %686 = vmatpush1.msra.mxu0 0.0
    %687 = vmatprep.mubr.f32.mxu0 0.0
    %v688 = vand.u32 %v67, 4294901760
    %689 = vmatmul.mubr.f32.gmra.mrb[0].mxu0 %v688
    %v690 = vpop.f32.mrb[0].mxu0
    %v691 = vadd.f32 %v594, %v690
    %v692 = vpop.f32.mrb[0].mxu0
    %v693 = vadd.f32 %v596, %v692
    %694 = vmatprep.mubr.f32.mxu0 0.0
    %v695 = vand.u32 %v70, 4294901760
    %696 = vmatmul.mubr.f32.gmra.mrb[0].mxu0 %v695
    %v697 = vpop.f32.mrb[0].mxu0
    %v698 = vadd.f32 %v601, %v697
    %v699 = vpop.f32.mrb[0].mxu0
    %v700 = vadd.f32 %v603, %v699
    %701 = vmatprep.mubr.f32.mxu0 0.0
    %v702 = vand.u32 %v73, 4294901760
    %703 = vmatmul.mubr.f32.gmra.mrb[0].mxu0 %v702
    %v704 = vpop.f32.mrb[0].mxu0
    %v705 = vadd.f32 %v608, %v704
    %v706 = vpop.f32.mrb[0].mxu0
    %v707 = vadd.f32 %v610, %v706
    %708 = vmatprep.mubr.f32.mxu0 0.0
    %v709 = vand.u32 %v76, 4294901760
    %710 = vmatmul.mubr.f32.gmra.mrb[0].mxu0 %v709
    %v711 = vpop.f32.mrb[0].mxu0
    %v712 = vadd.f32 %v615, %v711
    %v713 = vpop.f32.mrb[0].mxu0
    %v714 = vadd.f32 %v617, %v713
    %715 = vdwg.mxu0
    %v716 = vand.u32 %v40, 4294901760
    %717 = vmatprep.subr.mxu0 %v716
    %v718 = vand.u32 %v39, 4294901760
    %719 = vmatpush1.msra.mxu0 %v718
    %v720 = vand.u32 %v44, 4294901760
    %721 = vmatprep.subr.mxu0 %v720
    %v722 = vand.u32 %v43, 4294901760
    %723 = vmatpush1.msra.mxu0 %v722
    %724 = vmatprep.subr.mxu0 0.0
    %725 = vmatpush1.msra.mxu0 0.0
    %726 = vmatprep.subr.mxu0 0.0
    %727 = vmatpush1.msra.mxu0 0.0
    %728 = vmatprep.subr.mxu0 0.0
    %729 = vmatpush1.msra.mxu0 0.0
    %730 = vmatprep.subr.mxu0 0.0
    %731 = vmatpush1.msra.mxu0 0.0
    %732 = vmatprep.subr.mxu0 0.0
    %733 = vmatpush1.msra.mxu0 0.0
    %734 = vmatprep.subr.mxu0 0.0
    %735 = vmatpush1.msra.mxu0 0.0
    %736 = vmatprep.subr.mxu0 0.0
    %737 = vmatpush1.msra.mxu0 0.0
    %738 = vmatprep.subr.mxu0 0.0
    %739 = vmatpush1.msra.mxu0 0.0
    %740 = vmatprep.subr.mxu0 0.0
    %741 = vmatpush1.msra.mxu0 0.0
    %742 = vmatprep.subr.mxu0 0.0
    %743 = vmatpush1.msra.mxu0 0.0
    %744 = vmatprep.subr.mxu0 0.0
    %745 = vmatpush1.msra.mxu0 0.0
    %746 = vmatprep.subr.mxu0 0.0
    %747 = vmatpush1.msra.mxu0 0.0
    %748 = vmatprep.subr.mxu0 0.0
    %749 = vmatpush1.msra.mxu0 0.0
    %750 = vmatprep.subr.mxu0 0.0
    %751 = vmatpush1.msra.mxu0 0.0
    %752 = vmatprep.subr.mxu0 0.0
    %753 = vmatpush1.msra.mxu0 0.0
    %754 = vmatprep.subr.mxu0 0.0
    %755 = vmatpush1.msra.mxu0 0.0
    %756 = vmatprep.subr.mxu0 0.0
    %757 = vmatpush1.msra.mxu0 0.0
    %758 = vmatprep.subr.mxu0 0.0
    %759 = vmatpush1.msra.mxu0 0.0
    %760 = vmatprep.subr.mxu0 0.0
    %761 = vmatpush1.msra.mxu0 0.0
    %762 = vmatprep.subr.mxu0 0.0
    %763 = vmatpush1.msra.mxu0 0.0
    %764 = vmatprep.subr.mxu0 0.0
    %765 = vmatpush1.msra.mxu0 0.0
    %766 = vmatprep.subr.mxu0 0.0
    %767 = vmatpush1.msra.mxu0 0.0
    %768 = vmatprep.subr.mxu0 0.0
    %769 = vmatpush1.msra.mxu0 0.0
    %770 = vmatprep.subr.mxu0 0.0
    %771 = vmatpush1.msra.mxu0 0.0
    %772 = vmatprep.subr.mxu0 0.0
    %773 = vmatpush1.msra.mxu0 0.0
    %774 = vmatprep.subr.mxu0 0.0
    %775 = vmatpush1.msra.mxu0 0.0
    %776 = vmatprep.subr.mxu0 0.0
    %777 = vmatpush1.msra.mxu0 0.0
    %778 = vmatprep.subr.mxu0 0.0
    %779 = vmatpush1.msra.mxu0 0.0
    %780 = vmatprep.subr.mxu0 0.0
    %781 = vmatpush1.msra.mxu0 0.0
    %782 = vmatprep.subr.mxu0 0.0
    %783 = vmatpush1.msra.mxu0 0.0
    %784 = vmatprep.mubr.f32.mxu0 0.0
    %v785 = vand.u32 %v67, 4294901760
    %v786 = vsub.f32 %v67, %v785
    %v787 = vand.u32 %v786, 4294901760
    %v788 = vsub.f32 %v786, %v787
    %v789 = vand.u32 %v788, 4294901760
    %790 = vmatmul.mubr.f32.gmra.mrb[0].mxu0 %v789
    %v791 = vpop.f32.mrb[0].mxu0
    %v792 = vadd.f32 %v48, %v791
    %v793 = vpop.f32.mrb[0].mxu0
    %v794 = vadd.f32 %v48, %v793
    %795 = vmatprep.mubr.f32.mxu0 0.0
    %v796 = vand.u32 %v70, 4294901760
    %v797 = vsub.f32 %v70, %v796
    %v798 = vand.u32 %v797, 4294901760
    %v799 = vsub.f32 %v797, %v798
    %v800 = vand.u32 %v799, 4294901760
    %801 = vmatmul.mubr.f32.gmra.mrb[0].mxu0 %v800
    %v802 = vpop.f32.mrb[0].mxu0
    %v803 = vadd.f32 %v53, %v802
    %v804 = vpop.f32.mrb[0].mxu0
    %v805 = vadd.f32 %v53, %v804
    %806 = vmatprep.mubr.f32.mxu0 0.0
    %v807 = vand.u32 %v73, 4294901760
    %v808 = vsub.f32 %v73, %v807
    %v809 = vand.u32 %v808, 4294901760
    %v810 = vsub.f32 %v808, %v809
    %v811 = vand.u32 %v810, 4294901760
    %812 = vmatmul.mubr.f32.gmra.mrb[0].mxu0 %v811
    %v813 = vpop.f32.mrb[0].mxu0
    %v814 = vadd.f32 %v58, %v813
    %v815 = vpop.f32.mrb[0].mxu0
    %v816 = vadd.f32 %v58, %v815
    %817 = vmatprep.mubr.f32.mxu0 0.0
    %v818 = vand.u32 %v76, 4294901760
    %v819 = vsub.f32 %v76, %v818
    %v820 = vand.u32 %v819, 4294901760
    %v821 = vsub.f32 %v819, %v820
    %v822 = vand.u32 %v821, 4294901760
    %823 = vmatmul.mubr.f32.gmra.mrb[0].mxu0 %v822
    %v824 = vpop.f32.mrb[0].mxu0
    %v825 = vadd.f32 %v63, %v824
    %v826 = vpop.f32.mrb[0].mxu0
    %v827 = vadd.f32 %v63, %v826
    %828 = vdwg.mxu0
    %v829 = vand.u32 %v40, 4294901760
    %v830 = vsub.f32 %v40, %v829
    %v831 = vand.u32 %v830, 4294901760
    %v832 = vsub.f32 %v830, %v831
    %v833 = vand.u32 %v832, 4294901760
    %834 = vmatprep.subr.mxu0 %v833
    %v835 = vand.u32 %v39, 4294901760
    %v836 = vsub.f32 %v39, %v835
    %v837 = vand.u32 %v836, 4294901760
    %v838 = vsub.f32 %v836, %v837
    %v839 = vand.u32 %v838, 4294901760
    %840 = vmatpush1.msra.mxu0 %v839
    %v841 = vand.u32 %v44, 4294901760
    %v842 = vsub.f32 %v44, %v841
    %v843 = vand.u32 %v842, 4294901760
    %v844 = vsub.f32 %v842, %v843
    %v845 = vand.u32 %v844, 4294901760
    %846 = vmatprep.subr.mxu0 %v845
    %v847 = vand.u32 %v43, 4294901760
    %v848 = vsub.f32 %v43, %v847
    %v849 = vand.u32 %v848, 4294901760
    %v850 = vsub.f32 %v848, %v849
    %v851 = vand.u32 %v850, 4294901760
    %852 = vmatpush1.msra.mxu0 %v851
    %853 = vmatprep.subr.mxu0 0.0
    %854 = vmatpush1.msra.mxu0 0.0
    %855 = vmatprep.subr.mxu0 0.0
    %856 = vmatpush1.msra.mxu0 0.0
    %857 = vmatprep.subr.mxu0 0.0
    %858 = vmatpush1.msra.mxu0 0.0
    %859 = vmatprep.subr.mxu0 0.0
    %860 = vmatpush1.msra.mxu0 0.0
    %861 = vmatprep.subr.mxu0 0.0
    %862 = vmatpush1.msra.mxu0 0.0
    %863 = vmatprep.subr.mxu0 0.0
    %864 = vmatpush1.msra.mxu0 0.0
    %865 = vmatprep.subr.mxu0 0.0
    %866 = vmatpush1.msra.mxu0 0.0
    %867 = vmatprep.subr.mxu0 0.0
    %868 = vmatpush1.msra.mxu0 0.0
    %869 = vmatprep.subr.mxu0 0.0
    %870 = vmatpush1.msra.mxu0 0.0
    %871 = vmatprep.subr.mxu0 0.0
    %872 = vmatpush1.msra.mxu0 0.0
    %873 = vmatprep.subr.mxu0 0.0
    %874 = vmatpush1.msra.mxu0 0.0
    %875 = vmatprep.subr.mxu0 0.0
    %876 = vmatpush1.msra.mxu0 0.0
    %877 = vmatprep.subr.mxu0 0.0
    %878 = vmatpush1.msra.mxu0 0.0
    %879 = vmatprep.subr.mxu0 0.0
    %880 = vmatpush1.msra.mxu0 0.0
    %881 = vmatprep.subr.mxu0 0.0
    %882 = vmatpush1.msra.mxu0 0.0
    %883 = vmatprep.subr.mxu0 0.0
    %884 = vmatpush1.msra.mxu0 0.0
    %885 = vmatprep.subr.mxu0 0.0
    %886 = vmatpush1.msra.mxu0 0.0
    %887 = vmatprep.subr.mxu0 0.0
    %888 = vmatpush1.msra.mxu0 0.0
    %889 = vmatprep.subr.mxu0 0.0
    %890 = vmatpush1.msra.mxu0 0.0
    %891 = vmatprep.subr.mxu0 0.0
    %892 = vmatpush1.msra.mxu0 0.0
    %893 = vmatprep.subr.mxu0 0.0
    %894 = vmatpush1.msra.mxu0 0.0
    %895 = vmatprep.subr.mxu0 0.0
    %896 = vmatpush1.msra.mxu0 0.0
    %897 = vmatprep.subr.mxu0 0.0
    %898 = vmatpush1.msra.mxu0 0.0
    %899 = vmatprep.subr.mxu0 0.0
    %900 = vmatpush1.msra.mxu0 0.0
    %901 = vmatprep.subr.mxu0 0.0
    %902 = vmatpush1.msra.mxu0 0.0
    %903 = vmatprep.subr.mxu0 0.0
    %904 = vmatpush1.msra.mxu0 0.0
    %905 = vmatprep.subr.mxu0 0.0
    %906 = vmatpush1.msra.mxu0 0.0
    %907 = vmatprep.subr.mxu0 0.0
    %908 = vmatpush1.msra.mxu0 0.0
    %909 = vmatprep.subr.mxu0 0.0
    %910 = vmatpush1.msra.mxu0 0.0
    %911 = vmatprep.subr.mxu0 0.0
    %912 = vmatpush1.msra.mxu0 0.0
    %913 = vmatprep.mubr.f32.mxu0 0.0
    %v914 = vand.u32 %v67, 4294901760
    %915 = vmatmul.mubr.f32.gmra.mrb[0].mxu0 %v914
    %v916 = vpop.f32.mrb[0].mxu0
    %v917 = vadd.f32 %v792, %v916
    %v918 = vpop.f32.mrb[0].mxu0
    %v919 = vadd.f32 %v794, %v918
    %920 = vmatprep.mubr.f32.mxu0 0.0
    %v921 = vand.u32 %v70, 4294901760
    %922 = vmatmul.mubr.f32.gmra.mrb[0].mxu0 %v921
    %v923 = vpop.f32.mrb[0].mxu0
    %v924 = vadd.f32 %v803, %v923
    %v925 = vpop.f32.mrb[0].mxu0
    %v926 = vadd.f32 %v805, %v925
    %927 = vmatprep.mubr.f32.mxu0 0.0
    %v928 = vand.u32 %v73, 4294901760
    %929 = vmatmul.mubr.f32.gmra.mrb[0].mxu0 %v928
    %v930 = vpop.f32.mrb[0].mxu0
    %v931 = vadd.f32 %v814, %v930
    %v932 = vpop.f32.mrb[0].mxu0
    %v933 = vadd.f32 %v816, %v932
    %934 = vmatprep.mubr.f32.mxu0 0.0
    %v935 = vand.u32 %v76, 4294901760
    %936 = vmatmul.mubr.f32.gmra.mrb[0].mxu0 %v935
    %v937 = vpop.f32.mrb[0].mxu0
    %v938 = vadd.f32 %v825, %v937
    %v939 = vpop.f32.mrb[0].mxu0
    %v940 = vadd.f32 %v827, %v939
    %941 = vdwg.mxu0
    %v942 = vand.u32 %v40, 4294901760
    %v943 = vsub.f32 %v40, %v942
    %944 = vmatprep.subr.mxu0 %v943
    %v945 = vand.u32 %v39, 4294901760
    %v946 = vsub.f32 %v39, %v945
    %947 = vmatpush1.msra.mxu0 %v946
    %v948 = vand.u32 %v44, 4294901760
    %v949 = vsub.f32 %v44, %v948
    %950 = vmatprep.subr.mxu0 %v949
    %v951 = vand.u32 %v43, 4294901760
    %v952 = vsub.f32 %v43, %v951
    %953 = vmatpush1.msra.mxu0 %v952
    %954 = vmatprep.subr.mxu0 0.0
    %955 = vmatpush1.msra.mxu0 0.0
    %956 = vmatprep.subr.mxu0 0.0
    %957 = vmatpush1.msra.mxu0 0.0
    %958 = vmatprep.subr.mxu0 0.0
    %959 = vmatpush1.msra.mxu0 0.0
    %960 = vmatprep.subr.mxu0 0.0
    %961 = vmatpush1.msra.mxu0 0.0
    %962 = vmatprep.subr.mxu0 0.0
    %963 = vmatpush1.msra.mxu0 0.0
    %964 = vmatprep.subr.mxu0 0.0
    %965 = vmatpush1.msra.mxu0 0.0
    %966 = vmatprep.subr.mxu0 0.0
    %967 = vmatpush1.msra.mxu0 0.0
    %968 = vmatprep.subr.mxu0 0.0
    %969 = vmatpush1.msra.mxu0 0.0
    %970 = vmatprep.subr.mxu0 0.0
    %971 = vmatpush1.msra.mxu0 0.0
    %972 = vmatprep.subr.mxu0 0.0
    %973 = vmatpush1.msra.mxu0 0.0
    %974 = vmatprep.subr.mxu0 0.0
    %975 = vmatpush1.msra.mxu0 0.0
    %976 = vmatprep.subr.mxu0 0.0
    %977 = vmatpush1.msra.mxu0 0.0
    %978 = vmatprep.subr.mxu0 0.0
    %979 = vmatpush1.msra.mxu0 0.0
    %980 = vmatprep.subr.mxu0 0.0
    %981 = vmatpush1.msra.mxu0 0.0
    %982 = vmatprep.subr.mxu0 0.0
    %983 = vmatpush1.msra.mxu0 0.0
    %984 = vmatprep.subr.mxu0 0.0
    %985 = vmatpush1.msra.mxu0 0.0
    %986 = vmatprep.subr.mxu0 0.0
    %987 = vmatpush1.msra.mxu0 0.0
    %988 = vmatprep.subr.mxu0 0.0
    %989 = vmatpush1.msra.mxu0 0.0
    %990 = vmatprep.subr.mxu0 0.0
    %991 = vmatpush1.msra.mxu0 0.0
    %992 = vmatprep.subr.mxu0 0.0
    %993 = vmatpush1.msra.mxu0 0.0
    %994 = vmatprep.subr.mxu0 0.0
    %995 = vmatpush1.msra.mxu0 0.0
    %996 = vmatprep.subr.mxu0 0.0
    %997 = vmatpush1.msra.mxu0 0.0
    %998 = vmatprep.subr.mxu0 0.0
    %999 = vmatpush1.msra.mxu0 0.0
    %1000 = vmatprep.subr.mxu0 0.0
    %1001 = vmatpush1.msra.mxu0 0.0
    %1002 = vmatprep.subr.mxu0 0.0
    %1003 = vmatpush1.msra.mxu0 0.0
    %1004 = vmatprep.subr.mxu0 0.0
    %1005 = vmatpush1.msra.mxu0 0.0
    %1006 = vmatprep.subr.mxu0 0.0
    %1007 = vmatpush1.msra.mxu0 0.0
    %1008 = vmatprep.subr.mxu0 0.0
    %1009 = vmatpush1.msra.mxu0 0.0
    %1010 = vmatprep.subr.mxu0 0.0
    %1011 = vmatpush1.msra.mxu0 0.0
    %1012 = vmatprep.subr.mxu0 0.0
    %1013 = vmatpush1.msra.mxu0 0.0
    %1014 = vmatprep.mubr.f32.mxu0 0.0
    %v1015 = vand.u32 %v67, 4294901760
    %v1016 = vsub.f32 %v67, %v1015
    %1017 = vmatmul.mubr.f32.gmra.mrb[0].mxu0 %v1016
    %v1018 = vpop.f32.mrb[0].mxu0
    %v1019 = vadd.f32 %v917, %v1018
    %v1020 = vpop.f32.mrb[0].mxu0
    %v1021 = vadd.f32 %v919, %v1020
    %1022 = vmatprep.mubr.f32.mxu0 0.0
    %v1023 = vand.u32 %v70, 4294901760
    %v1024 = vsub.f32 %v70, %v1023
    %1025 = vmatmul.mubr.f32.gmra.mrb[0].mxu0 %v1024
    %v1026 = vpop.f32.mrb[0].mxu0
    %v1027 = vadd.f32 %v924, %v1026
    %v1028 = vpop.f32.mrb[0].mxu0
    %v1029 = vadd.f32 %v926, %v1028
    %1030 = vmatprep.mubr.f32.mxu0 0.0
    %v1031 = vand.u32 %v73, 4294901760
    %v1032 = vsub.f32 %v73, %v1031
    %1033 = vmatmul.mubr.f32.gmra.mrb[0].mxu0 %v1032
    %v1034 = vpop.f32.mrb[0].mxu0
    %v1035 = vadd.f32 %v931, %v1034
    %v1036 = vpop.f32.mrb[0].mxu0
    %v1037 = vadd.f32 %v933, %v1036
    %1038 = vmatprep.mubr.f32.mxu0 0.0
    %v1039 = vand.u32 %v76, 4294901760
    %v1040 = vsub.f32 %v76, %v1039
    %1041 = vmatmul.mubr.f32.gmra.mrb[0].mxu0 %v1040
    %v1042 = vpop.f32.mrb[0].mxu0
    %v1043 = vadd.f32 %v938, %v1042
    %v1044 = vpop.f32.mrb[0].mxu0
    %v1045 = vadd.f32 %v940, %v1044
    %1046 = vdwg.mxu0
    %v1047 = vand.u32 %v40, 4294901760
    %1048 = vmatprep.subr.mxu0 %v1047
    %v1049 = vand.u32 %v39, 4294901760
    %1050 = vmatpush1.msra.mxu0 %v1049
    %v1051 = vand.u32 %v44, 4294901760
    %1052 = vmatprep.subr.mxu0 %v1051
    %v1053 = vand.u32 %v43, 4294901760
    %1054 = vmatpush1.msra.mxu0 %v1053
    %1055 = vmatprep.subr.mxu0 0.0
    %1056 = vmatpush1.msra.mxu0 0.0
    %1057 = vmatprep.subr.mxu0 0.0
    %1058 = vmatpush1.msra.mxu0 0.0
    %1059 = vmatprep.subr.mxu0 0.0
    %1060 = vmatpush1.msra.mxu0 0.0
    %1061 = vmatprep.subr.mxu0 0.0
    %1062 = vmatpush1.msra.mxu0 0.0
    %1063 = vmatprep.subr.mxu0 0.0
    %1064 = vmatpush1.msra.mxu0 0.0
    %1065 = vmatprep.subr.mxu0 0.0
    %1066 = vmatpush1.msra.mxu0 0.0
    %1067 = vmatprep.subr.mxu0 0.0
    %1068 = vmatpush1.msra.mxu0 0.0
    %1069 = vmatprep.subr.mxu0 0.0
    %1070 = vmatpush1.msra.mxu0 0.0
    %1071 = vmatprep.subr.mxu0 0.0
    %1072 = vmatpush1.msra.mxu0 0.0
    %1073 = vmatprep.subr.mxu0 0.0
    %1074 = vmatpush1.msra.mxu0 0.0
    %1075 = vmatprep.subr.mxu0 0.0
    %1076 = vmatpush1.msra.mxu0 0.0
    %1077 = vmatprep.subr.mxu0 0.0
    %1078 = vmatpush1.msra.mxu0 0.0
    %1079 = vmatprep.subr.mxu0 0.0
    %1080 = vmatpush1.msra.mxu0 0.0
    %1081 = vmatprep.subr.mxu0 0.0
    %1082 = vmatpush1.msra.mxu0 0.0
    %1083 = vmatprep.subr.mxu0 0.0
    %1084 = vmatpush1.msra.mxu0 0.0
    %1085 = vmatprep.subr.mxu0 0.0
    %1086 = vmatpush1.msra.mxu0 0.0
    %1087 = vmatprep.subr.mxu0 0.0
    %1088 = vmatpush1.msra.mxu0 0.0
    %1089 = vmatprep.subr.mxu0 0.0
    %1090 = vmatpush1.msra.mxu0 0.0
    %1091 = vmatprep.subr.mxu0 0.0
    %1092 = vmatpush1.msra.mxu0 0.0
    %1093 = vmatprep.subr.mxu0 0.0
    %1094 = vmatpush1.msra.mxu0 0.0
    %1095 = vmatprep.subr.mxu0 0.0
    %1096 = vmatpush1.msra.mxu0 0.0
    %1097 = vmatprep.subr.mxu0 0.0
    %1098 = vmatpush1.msra.mxu0 0.0
    %1099 = vmatprep.subr.mxu0 0.0
    %1100 = vmatpush1.msra.mxu0 0.0
    %1101 = vmatprep.subr.mxu0 0.0
    %1102 = vmatpush1.msra.mxu0 0.0
    %1103 = vmatprep.subr.mxu0 0.0
    %1104 = vmatpush1.msra.mxu0 0.0
    %1105 = vmatprep.subr.mxu0 0.0
    %1106 = vmatpush1.msra.mxu0 0.0
    %1107 = vmatprep.subr.mxu0 0.0
    %1108 = vmatpush1.msra.mxu0 0.0
    %1109 = vmatprep.subr.mxu0 0.0
    %1110 = vmatpush1.msra.mxu0 0.0
    %1111 = vmatprep.subr.mxu0 0.0
    %1112 = vmatpush1.msra.mxu0 0.0
    %1113 = vmatprep.subr.mxu0 0.0
    %1114 = vmatpush1.msra.mxu0 0.0
    %1115 = vmatprep.mubr.f32.mxu0 0.0
    %v1116 = vand.u32 %v67, 4294901760
    %v1117 = vsub.f32 %v67, %v1116
    %v1118 = vand.u32 %v1117, 4294901760
    %1119 = vmatmul.mubr.f32.gmra.mrb[0].mxu0 %v1118
    %v1120 = vpop.f32.mrb[0].mxu0
    %v1121 = vadd.f32 %v1019, %v1120
    %v1122 = vpop.f32.mrb[0].mxu0
    %v1123 = vadd.f32 %v1021, %v1122
    %1124 = vmatprep.mubr.f32.mxu0 0.0
    %v1125 = vand.u32 %v70, 4294901760
    %v1126 = vsub.f32 %v70, %v1125
    %v1127 = vand.u32 %v1126, 4294901760
    %1128 = vmatmul.mubr.f32.gmra.mrb[0].mxu0 %v1127
    %v1129 = vpop.f32.mrb[0].mxu0
    %v1130 = vadd.f32 %v1027, %v1129
    %v1131 = vpop.f32.mrb[0].mxu0
    %v1132 = vadd.f32 %v1029, %v1131
    %1133 = vmatprep.mubr.f32.mxu0 0.0
    %v1134 = vand.u32 %v73, 4294901760
    %v1135 = vsub.f32 %v73, %v1134
    %v1136 = vand.u32 %v1135, 4294901760
    %1137 = vmatmul.mubr.f32.gmra.mrb[0].mxu0 %v1136
    %v1138 = vpop.f32.mrb[0].mxu0
    %v1139 = vadd.f32 %v1035, %v1138
    %v1140 = vpop.f32.mrb[0].mxu0
    %v1141 = vadd.f32 %v1037, %v1140
    %1142 = vmatprep.mubr.f32.mxu0 0.0
    %v1143 = vand.u32 %v76, 4294901760
    %v1144 = vsub.f32 %v76, %v1143
    %v1145 = vand.u32 %v1144, 4294901760
    %1146 = vmatmul.mubr.f32.gmra.mrb[0].mxu0 %v1145
    %v1147 = vpop.f32.mrb[0].mxu0
    %v1148 = vadd.f32 %v1043, %v1147
    %v1149 = vpop.f32.mrb[0].mxu0
    %v1150 = vadd.f32 %v1045, %v1149
    %1151 = vdwg.mxu0
    %v1152 = vand.u32 %v40, 4294901760
    %v1153 = vsub.f32 %v40, %v1152
    %v1154 = vand.u32 %v1153, 4294901760
    %1155 = vmatprep.subr.mxu0 %v1154
    %v1156 = vand.u32 %v39, 4294901760
    %v1157 = vsub.f32 %v39, %v1156
    %v1158 = vand.u32 %v1157, 4294901760
    %1159 = vmatpush1.msra.mxu0 %v1158
    %v1160 = vand.u32 %v44, 4294901760
    %v1161 = vsub.f32 %v44, %v1160
    %v1162 = vand.u32 %v1161, 4294901760
    %1163 = vmatprep.subr.mxu0 %v1162
    %v1164 = vand.u32 %v43, 4294901760
    %v1165 = vsub.f32 %v43, %v1164
    %v1166 = vand.u32 %v1165, 4294901760
    %1167 = vmatpush1.msra.mxu0 %v1166
    %1168 = vmatprep.subr.mxu0 0.0
    %1169 = vmatpush1.msra.mxu0 0.0
    %1170 = vmatprep.subr.mxu0 0.0
    %1171 = vmatpush1.msra.mxu0 0.0
    %1172 = vmatprep.subr.mxu0 0.0
    %1173 = vmatpush1.msra.mxu0 0.0
    %1174 = vmatprep.subr.mxu0 0.0
    %1175 = vmatpush1.msra.mxu0 0.0
    %1176 = vmatprep.subr.mxu0 0.0
    %1177 = vmatpush1.msra.mxu0 0.0
    %1178 = vmatprep.subr.mxu0 0.0
    %1179 = vmatpush1.msra.mxu0 0.0
    %1180 = vmatprep.subr.mxu0 0.0
    %1181 = vmatpush1.msra.mxu0 0.0
    %1182 = vmatprep.subr.mxu0 0.0
    %1183 = vmatpush1.msra.mxu0 0.0
    %1184 = vmatprep.subr.mxu0 0.0
    %1185 = vmatpush1.msra.mxu0 0.0
    %1186 = vmatprep.subr.mxu0 0.0
    %1187 = vmatpush1.msra.mxu0 0.0
    %1188 = vmatprep.subr.mxu0 0.0
    %1189 = vmatpush1.msra.mxu0 0.0
    %1190 = vmatprep.subr.mxu0 0.0
    %1191 = vmatpush1.msra.mxu0 0.0
    %1192 = vmatprep.subr.mxu0 0.0
    %1193 = vmatpush1.msra.mxu0 0.0
    %1194 = vmatprep.subr.mxu0 0.0
    %1195 = vmatpush1.msra.mxu0 0.0
    %1196 = vmatprep.subr.mxu0 0.0
    %1197 = vmatpush1.msra.mxu0 0.0
    %1198 = vmatprep.subr.mxu0 0.0
    %1199 = vmatpush1.msra.mxu0 0.0
    %1200 = vmatprep.subr.mxu0 0.0
    %1201 = vmatpush1.msra.mxu0 0.0
    %1202 = vmatprep.subr.mxu0 0.0
    %1203 = vmatpush1.msra.mxu0 0.0
    %1204 = vmatprep.subr.mxu0 0.0
    %1205 = vmatpush1.msra.mxu0 0.0
    %1206 = vmatprep.subr.mxu0 0.0
    %1207 = vmatpush1.msra.mxu0 0.0
    %1208 = vmatprep.subr.mxu0 0.0
    %1209 = vmatpush1.msra.mxu0 0.0
    %1210 = vmatprep.subr.mxu0 0.0
    %1211 = vmatpush1.msra.mxu0 0.0
    %1212 = vmatprep.subr.mxu0 0.0
    %1213 = vmatpush1.msra.mxu0 0.0
    %1214 = vmatprep.subr.mxu0 0.0
    %1215 = vmatpush1.msra.mxu0 0.0
    %1216 = vmatprep.subr.mxu0 0.0
    %1217 = vmatpush1.msra.mxu0 0.0
    %1218 = vmatprep.subr.mxu0 0.0
    %1219 = vmatpush1.msra.mxu0 0.0
    %1220 = vmatprep.subr.mxu0 0.0
    %1221 = vmatpush1.msra.mxu0 0.0
    %1222 = vmatprep.subr.mxu0 0.0
    %1223 = vmatpush1.msra.mxu0 0.0
    %1224 = vmatprep.subr.mxu0 0.0
    %1225 = vmatpush1.msra.mxu0 0.0
    %1226 = vmatprep.subr.mxu0 0.0
    %1227 = vmatpush1.msra.mxu0 0.0
    %1228 = vmatprep.mubr.f32.mxu0 0.0
    %v1229 = vand.u32 %v67, 4294901760
    %1230 = vmatmul.mubr.f32.gmra.mrb[0].mxu0 %v1229
    %v1231 = vpop.f32.mrb[0].mxu0
    %v1232 = vadd.f32 %v1121, %v1231
    %v1233 = vpop.f32.mrb[0].mxu0
    %v1234 = vadd.f32 %v1123, %v1233
    %1235 = vmatprep.mubr.f32.mxu0 0.0
    %v1236 = vand.u32 %v70, 4294901760
    %1237 = vmatmul.mubr.f32.gmra.mrb[0].mxu0 %v1236
    %v1238 = vpop.f32.mrb[0].mxu0
    %v1239 = vadd.f32 %v1130, %v1238
    %v1240 = vpop.f32.mrb[0].mxu0
    %v1241 = vadd.f32 %v1132, %v1240
    %1242 = vmatprep.mubr.f32.mxu0 0.0
    %v1243 = vand.u32 %v73, 4294901760
    %1244 = vmatmul.mubr.f32.gmra.mrb[0].mxu0 %v1243
    %v1245 = vpop.f32.mrb[0].mxu0
    %v1246 = vadd.f32 %v1139, %v1245
    %v1247 = vpop.f32.mrb[0].mxu0
    %v1248 = vadd.f32 %v1141, %v1247
    %1249 = vmatprep.mubr.f32.mxu0 0.0
    %v1250 = vand.u32 %v76, 4294901760
    %1251 = vmatmul.mubr.f32.gmra.mrb[0].mxu0 %v1250
    %v1252 = vpop.f32.mrb[0].mxu0
    %v1253 = vadd.f32 %v1148, %v1252
    %v1254 = vpop.f32.mrb[0].mxu0
    %v1255 = vadd.f32 %v1150, %v1254
    %1256 = vdwg.mxu0
    %v1257 = vand.u32 %v40, 4294901760
    %1258 = vmatprep.subr.mxu0 %v1257
    %v1259 = vand.u32 %v39, 4294901760
    %1260 = vmatpush1.msra.mxu0 %v1259
    %v1261 = vand.u32 %v44, 4294901760
    %1262 = vmatprep.subr.mxu0 %v1261
    %v1263 = vand.u32 %v43, 4294901760
    %1264 = vmatpush1.msra.mxu0 %v1263
    %1265 = vmatprep.subr.mxu0 0.0
    %1266 = vmatpush1.msra.mxu0 0.0
    %1267 = vmatprep.subr.mxu0 0.0
    %1268 = vmatpush1.msra.mxu0 0.0
    %1269 = vmatprep.subr.mxu0 0.0
    %1270 = vmatpush1.msra.mxu0 0.0
    %1271 = vmatprep.subr.mxu0 0.0
    %1272 = vmatpush1.msra.mxu0 0.0
    %1273 = vmatprep.subr.mxu0 0.0
    %1274 = vmatpush1.msra.mxu0 0.0
    %1275 = vmatprep.subr.mxu0 0.0
    %1276 = vmatpush1.msra.mxu0 0.0
    %1277 = vmatprep.subr.mxu0 0.0
    %1278 = vmatpush1.msra.mxu0 0.0
    %1279 = vmatprep.subr.mxu0 0.0
    %1280 = vmatpush1.msra.mxu0 0.0
    %1281 = vmatprep.subr.mxu0 0.0
    %1282 = vmatpush1.msra.mxu0 0.0
    %1283 = vmatprep.subr.mxu0 0.0
    %1284 = vmatpush1.msra.mxu0 0.0
    %1285 = vmatprep.subr.mxu0 0.0
    %1286 = vmatpush1.msra.mxu0 0.0
    %1287 = vmatprep.subr.mxu0 0.0
    %1288 = vmatpush1.msra.mxu0 0.0
    %1289 = vmatprep.subr.mxu0 0.0
    %1290 = vmatpush1.msra.mxu0 0.0
    %1291 = vmatprep.subr.mxu0 0.0
    %1292 = vmatpush1.msra.mxu0 0.0
    %1293 = vmatprep.subr.mxu0 0.0
    %1294 = vmatpush1.msra.mxu0 0.0
    %1295 = vmatprep.subr.mxu0 0.0
    %1296 = vmatpush1.msra.mxu0 0.0
    %1297 = vmatprep.subr.mxu0 0.0
    %1298 = vmatpush1.msra.mxu0 0.0
    %1299 = vmatprep.subr.mxu0 0.0
    %1300 = vmatpush1.msra.mxu0 0.0
    %1301 = vmatprep.subr.mxu0 0.0
    %1302 = vmatpush1.msra.mxu0 0.0
    %1303 = vmatprep.subr.mxu0 0.0
    %1304 = vmatpush1.msra.mxu0 0.0
    %1305 = vmatprep.subr.mxu0 0.0
    %1306 = vmatpush1.msra.mxu0 0.0
    %1307 = vmatprep.subr.mxu0 0.0
    %1308 = vmatpush1.msra.mxu0 0.0
    %1309 = vmatprep.subr.mxu0 0.0
    %1310 = vmatpush1.msra.mxu0 0.0
    %1311 = vmatprep.subr.mxu0 0.0
    %1312 = vmatpush1.msra.mxu0 0.0
    %1313 = vmatprep.subr.mxu0 0.0
    %1314 = vmatpush1.msra.mxu0 0.0
    %1315 = vmatprep.subr.mxu0 0.0
    %1316 = vmatpush1.msra.mxu0 0.0
    %1317 = vmatprep.subr.mxu0 0.0
    %1318 = vmatpush1.msra.mxu0 0.0
    %1319 = vmatprep.subr.mxu0 0.0
    %1320 = vmatpush1.msra.mxu0 0.0
    %1321 = vmatprep.subr.mxu0 0.0
    %1322 = vmatpush1.msra.mxu0 0.0
    %1323 = vmatprep.subr.mxu0 0.0
    %1324 = vmatpush1.msra.mxu0 0.0
    %1325 = vmatprep.mubr.f32.mxu0 0.0
    %v1326 = vand.u32 %v67, 4294901760
    %1327 = vmatmul.mubr.f32.gmra.mrb[0].mxu0 %v1326
    %v1328 = vpop.f32.mrb[0].mxu0
    %v1329 = vadd.f32 %v1232, %v1328
    %v1330 = vpop.f32.mrb[0].mxu0
    %v1331 = vadd.f32 %v1234, %v1330
    %1332 = vmatprep.mubr.f32.mxu0 0.0
    %v1333 = vand.u32 %v70, 4294901760
    %1334 = vmatmul.mubr.f32.gmra.mrb[0].mxu0 %v1333
    %v1335 = vpop.f32.mrb[0].mxu0
    %v1336 = vadd.f32 %v1239, %v1335
    %v1337 = vpop.f32.mrb[0].mxu0
    %v1338 = vadd.f32 %v1241, %v1337
    %1339 = vmatprep.mubr.f32.mxu0 0.0
    %v1340 = vand.u32 %v73, 4294901760
    %1341 = vmatmul.mubr.f32.gmra.mrb[0].mxu0 %v1340
    %v1342 = vpop.f32.mrb[0].mxu0
    %v1343 = vadd.f32 %v1246, %v1342
    %v1344 = vpop.f32.mrb[0].mxu0
    %v1345 = vadd.f32 %v1248, %v1344
    %1346 = vmatprep.mubr.f32.mxu0 0.0
    %v1347 = vand.u32 %v76, 4294901760
    %1348 = vmatmul.mubr.f32.gmra.mrb[0].mxu0 %v1347
    %v1349 = vpop.f32.mrb[0].mxu0
    %v1350 = vadd.f32 %v1253, %v1349
    %v1351 = vpop.f32.mrb[0].mxu0
    %v1352 = vadd.f32 %v1255, %v1351
    %1353 = vdwg.mxu0
    %v1354 = vmax.f32 %v691, 0.0
    %v1355 = vmax.f32 %v693, 0.0
    %v1356 = vmax.f32 %v1329, 0.0
    %v1357 = vmax.f32 %v1331, 0.0
    %v1358 = vmax.f32 %v698, 0.0
    %v1359 = vmax.f32 %v700, 0.0
    %v1360 = vmax.f32 %v1336, 0.0
    %v1361 = vmax.f32 %v1338, 0.0
    %v1362 = vmax.f32 %v705, 0.0
    %v1363 = vmax.f32 %v707, 0.0
    %v1364 = vmax.f32 %v1343, 0.0
    %v1365 = vmax.f32 %v1345, 0.0
    %v1366 = vmax.f32 %v712, 0.0
    %v1367 = vmax.f32 %v714, 0.0
    %v1368 = vmax.f32 %v1350, 0.0
    %v1369 = vmax.f32 %v1352, 0.0
    %1370 = vst [vmem:[#allocation5] sm:$0xff] %v1354
    %1371 = vst [vmem:[#allocation5 + $0x8] sm:$0xff] %v1355
    %1372 = vst [vmem:[#allocation5 + $0x10] sm:$0xff] %v1356
    %1373 = vst [vmem:[#allocation5 + $0x18] sm:$0xff] %v1357
    %1374 = vst [vmem:[#allocation5 + $0x20] sm:$0xff] %v1358
    %1375 = vst [vmem:[#allocation5 + $0x28] sm:$0xff] %v1359
    %1376 = vst [vmem:[#allocation5 + $0x30] sm:$0xff] %v1360
    %1377 = vst [vmem:[#allocation5 + $0x38] sm:$0xff] %v1361
    %1378 = vst [vmem:[#allocation5 + $0x40] sm:$0xff] %v1362
    %1379 = vst [vmem:[#allocation5 + $0x48] sm:$0xff] %v1363
    %1380 = vst [vmem:[#allocation5 + $0x50] sm:$0xff] %v1364
    %1381 = vst [vmem:[#allocation5 + $0x58] sm:$0xff] %v1365
    %1382 = vst [vmem:[#allocation5 + $0x60] sm:$0xff] %v1366
    %1383 = vst [vmem:[#allocation5 + $0x68] sm:$0xff] %v1367
    %1384 = vst [vmem:[#allocation5 + $0x70] sm:$0xff] %v1368
    %1385 = vst [vmem:[#allocation5 + $0x78] sm:$0xff] %v1369
    %s1386 = scalar_lea.vmem [#allocation2], 64
    %v1387 = vld [vmem:[%s1386] sm:$0xff]
    %v1388 = vld [vmem:[%s1386 + $0x8] sm:$0xff]
    %v1389 = vld [vmem:[%s1386 + $0x10] sm:$0xff]
    %v1390 = vld [vmem:[%s1386 + $0x18] sm:$0xff]
    %v1391 = vld [vmem:[%s1386 + $0x20] sm:$0xff]
    %v1392 = vld [vmem:[%s1386 + $0x28] sm:$0xff]
    %v1393 = vld [vmem:[%s1386 + $0x30] sm:$0xff]
    %v1394 = vld [vmem:[%s1386 + $0x38] sm:$0xff]
    %v1395 = vand.u32 %v1388, 4294901760
    %1396 = vmatprep.subr.mxu0 %v1395
    %v1397 = vand.u32 %v1387, 4294901760
    %1398 = vmatpush1.msra.mxu0 %v1397
    %v1399 = vand.u32 %v1392, 4294901760
    %1400 = vmatprep.subr.mxu0 %v1399
    %v1401 = vand.u32 %v1391, 4294901760
    %1402 = vmatpush1.msra.mxu0 %v1401
    %1403 = vmatprep.subr.mxu0 0.0
    %1404 = vmatpush1.msra.mxu0 0.0
    %1405 = vmatprep.subr.mxu0 0.0
    %1406 = vmatpush1.msra.mxu0 0.0
    %1407 = vmatprep.subr.mxu0 0.0
    %1408 = vmatpush1.msra.mxu0 0.0
    %1409 = vmatprep.subr.mxu0 0.0
    %1410 = vmatpush1.msra.mxu0 0.0
    %1411 = vmatprep.subr.mxu0 0.0
    %1412 = vmatpush1.msra.mxu0 0.0
    %1413 = vmatprep.subr.mxu0 0.0
    %1414 = vmatpush1.msra.mxu0 0.0
    %1415 = vmatprep.subr.mxu0 0.0
    %1416 = vmatpush1.msra.mxu0 0.0
    %1417 = vmatprep.subr.mxu0 0.0
    %1418 = vmatpush1.msra.mxu0 0.0
    %1419 = vmatprep.subr.mxu0 0.0
    %1420 = vmatpush1.msra.mxu0 0.0
    %1421 = vmatprep.subr.mxu0 0.0
    %1422 = vmatpush1.msra.mxu0 0.0
    %1423 = vmatprep.subr.mxu0 0.0
    %1424 = vmatpush1.msra.mxu0 0.0
    %1425 = vmatprep.subr.mxu0 0.0
    %1426 = vmatpush1.msra.mxu0 0.0
    %1427 = vmatprep.subr.mxu0 0.0
    %1428 = vmatpush1.msra.mxu0 0.0
    %1429 = vmatprep.subr.mxu0 0.0
    %1430 = vmatpush1.msra.mxu0 0.0
    %1431 = vmatprep.subr.mxu0 0.0
    %1432 = vmatpush1.msra.mxu0 0.0
    %1433 = vmatprep.subr.mxu0 0.0
    %1434 = vmatpush1.msra.mxu0 0.0
    %1435 = vmatprep.subr.mxu0 0.0
    %1436 = vmatpush1.msra.mxu0 0.0
    %1437 = vmatprep.subr.mxu0 0.0
    %1438 = vmatpush1.msra.mxu0 0.0
    %1439 = vmatprep.subr.mxu0 0.0
    %1440 = vmatpush1.msra.mxu0 0.0
    %1441 = vmatprep.subr.mxu0 0.0
    %1442 = vmatpush1.msra.mxu0 0.0
    %1443 = vmatprep.subr.mxu0 0.0
    %1444 = vmatpush1.msra.mxu0 0.0
    %1445 = vmatprep.subr.mxu0 0.0
    %1446 = vmatpush1.msra.mxu0 0.0
    %1447 = vmatprep.subr.mxu0 0.0
    %1448 = vmatpush1.msra.mxu0 0.0
    %1449 = vmatprep.subr.mxu0 0.0
    %1450 = vmatpush1.msra.mxu0 0.0
    %1451 = vmatprep.subr.mxu0 0.0
    %1452 = vmatpush1.msra.mxu0 0.0
    %1453 = vmatprep.subr.mxu0 0.0
    %1454 = vmatpush1.msra.mxu0 0.0
    %1455 = vmatprep.subr.mxu0 0.0
    %1456 = vmatpush1.msra.mxu0 0.0
    %1457 = vmatprep.subr.mxu0 0.0
    %1458 = vmatpush1.msra.mxu0 0.0
    %1459 = vmatprep.subr.mxu0 0.0
    %1460 = vmatpush1.msra.mxu0 0.0
    %1461 = vmatprep.subr.mxu0 0.0
    %1462 = vmatpush1.msra.mxu0 0.0
    %1463 = vmatprep.mubr.f32.mxu0 0.0
    %v1464 = vand.u32 %v67, 4294901760
    %v1465 = vsub.f32 %v67, %v1464
    %v1466 = vand.u32 %v1465, 4294901760
    %v1467 = vsub.f32 %v1465, %v1466
    %v1468 = vand.u32 %v1467, 4294901760
    %1469 = vmatmul.mubr.f32.gmra.mrb[0].mxu0 %v1468
    %v1470 = vpop.f32.mrb[0].mxu0
    %v1471 = vadd.f32 %v48, %v1470
    %v1472 = vpop.f32.mrb[0].mxu0
    %v1473 = vadd.f32 %v48, %v1472
    %1474 = vmatprep.mubr.f32.mxu0 0.0
    %v1475 = vand.u32 %v70, 4294901760
    %v1476 = vsub.f32 %v70, %v1475
    %v1477 = vand.u32 %v1476, 4294901760
    %v1478 = vsub.f32 %v1476, %v1477
    %v1479 = vand.u32 %v1478, 4294901760
    %1480 = vmatmul.mubr.f32.gmra.mrb[0].mxu0 %v1479
    %v1481 = vpop.f32.mrb[0].mxu0
    %v1482 = vadd.f32 %v53, %v1481
    %v1483 = vpop.f32.mrb[0].mxu0
    %v1484 = vadd.f32 %v53, %v1483
    %1485 = vmatprep.mubr.f32.mxu0 0.0
    %v1486 = vand.u32 %v73, 4294901760
    %v1487 = vsub.f32 %v73, %v1486
    %v1488 = vand.u32 %v1487, 4294901760
    %v1489 = vsub.f32 %v1487, %v1488
    %v1490 = vand.u32 %v1489, 4294901760
    %1491 = vmatmul.mubr.f32.gmra.mrb[0].mxu0 %v1490
    %v1492 = vpop.f32.mrb[0].mxu0
    %v1493 = vadd.f32 %v58, %v1492
    %v1494 = vpop.f32.mrb[0].mxu0
    %v1495 = vadd.f32 %v58, %v1494
    %1496 = vmatprep.mubr.f32.mxu0 0.0
    %v1497 = vand.u32 %v76, 4294901760
    %v1498 = vsub.f32 %v76, %v1497
    %v1499 = vand.u32 %v1498, 4294901760
    %v1500 = vsub.f32 %v1498, %v1499
    %v1501 = vand.u32 %v1500, 4294901760
    %1502 = vmatmul.mubr.f32.gmra.mrb[0].mxu0 %v1501
    %v1503 = vpop.f32.mrb[0].mxu0
    %v1504 = vadd.f32 %v63, %v1503
    %v1505 = vpop.f32.mrb[0].mxu0
    %v1506 = vadd.f32 %v63, %v1505
    %1507 = vdwg.mxu0
    %v1508 = vand.u32 %v1388, 4294901760
    %v1509 = vsub.f32 %v1388, %v1508
    %v1510 = vand.u32 %v1509, 4294901760
    %v1511 = vsub.f32 %v1509, %v1510
    %v1512 = vand.u32 %v1511, 4294901760
    %1513 = vmatprep.subr.mxu0 %v1512
    %v1514 = vand.u32 %v1387, 4294901760
    %v1515 = vsub.f32 %v1387, %v1514
    %v1516 = vand.u32 %v1515, 4294901760
    %v1517 = vsub.f32 %v1515, %v1516
    %v1518 = vand.u32 %v1517, 4294901760
    %1519 = vmatpush1.msra.mxu0 %v1518
    %v1520 = vand.u32 %v1392, 4294901760
    %v1521 = vsub.f32 %v1392, %v1520
    %v1522 = vand.u32 %v1521, 4294901760
    %v1523 = vsub.f32 %v1521, %v1522
    %v1524 = vand.u32 %v1523, 4294901760
    %1525 = vmatprep.subr.mxu0 %v1524
    %v1526 = vand.u32 %v1391, 4294901760
    %v1527 = vsub.f32 %v1391, %v1526
    %v1528 = vand.u32 %v1527, 4294901760
    %v1529 = vsub.f32 %v1527, %v1528
    %v1530 = vand.u32 %v1529, 4294901760
    %1531 = vmatpush1.msra.mxu0 %v1530
    %1532 = vmatprep.subr.mxu0 0.0
    %1533 = vmatpush1.msra.mxu0 0.0
    %1534 = vmatprep.subr.mxu0 0.0
    %1535 = vmatpush1.msra.mxu0 0.0
    %1536 = vmatprep.subr.mxu0 0.0
    %1537 = vmatpush1.msra.mxu0 0.0
    %1538 = vmatprep.subr.mxu0 0.0
    %1539 = vmatpush1.msra.mxu0 0.0
    %1540 = vmatprep.subr.mxu0 0.0
    %1541 = vmatpush1.msra.mxu0 0.0
    %1542 = vmatprep.subr.mxu0 0.0
    %1543 = vmatpush1.msra.mxu0 0.0
    %1544 = vmatprep.subr.mxu0 0.0
    %1545 = vmatpush1.msra.mxu0 0.0
    %1546 = vmatprep.subr.mxu0 0.0
    %1547 = vmatpush1.msra.mxu0 0.0
    %1548 = vmatprep.subr.mxu0 0.0
    %1549 = vmatpush1.msra.mxu0 0.0
    %1550 = vmatprep.subr.mxu0 0.0
    %1551 = vmatpush1.msra.mxu0 0.0
    %1552 = vmatprep.subr.mxu0 0.0
    %1553 = vmatpush1.msra.mxu0 0.0
    %1554 = vmatprep.subr.mxu0 0.0
    %1555 = vmatpush1.msra.mxu0 0.0
    %1556 = vmatprep.subr.mxu0 0.0
    %1557 = vmatpush1.msra.mxu0 0.0
    %1558 = vmatprep.subr.mxu0 0.0
    %1559 = vmatpush1.msra.mxu0 0.0
    %1560 = vmatprep.subr.mxu0 0.0
    %1561 = vmatpush1.msra.mxu0 0.0
    %1562 = vmatprep.subr.mxu0 0.0
    %1563 = vmatpush1.msra.mxu0 0.0
    %1564 = vmatprep.subr.mxu0 0.0
    %1565 = vmatpush1.msra.mxu0 0.0
    %1566 = vmatprep.subr.mxu0 0.0
    %1567 = vmatpush1.msra.mxu0 0.0
    %1568 = vmatprep.subr.mxu0 0.0
    %1569 = vmatpush1.msra.mxu0 0.0
    %1570 = vmatprep.subr.mxu0 0.0
    %1571 = vmatpush1.msra.mxu0 0.0
    %1572 = vmatprep.subr.mxu0 0.0
    %1573 = vmatpush1.msra.mxu0 0.0
    %1574 = vmatprep.subr.mxu0 0.0
    %1575 = vmatpush1.msra.mxu0 0.0
    %1576 = vmatprep.subr.mxu0 0.0
    %1577 = vmatpush1.msra.mxu0 0.0
    %1578 = vmatprep.subr.mxu0 0.0
    %1579 = vmatpush1.msra.mxu0 0.0
    %1580 = vmatprep.subr.mxu0 0.0
    %1581 = vmatpush1.msra.mxu0 0.0
    %1582 = vmatprep.subr.mxu0 0.0
    %1583 = vmatpush1.msra.mxu0 0.0
    %1584 = vmatprep.subr.mxu0 0.0
    %1585 = vmatpush1.msra.mxu0 0.0
    %1586 = vmatprep.subr.mxu0 0.0
    %1587 = vmatpush1.msra.mxu0 0.0
    %1588 = vmatprep.subr.mxu0 0.0
    %1589 = vmatpush1.msra.mxu0 0.0
    %1590 = vmatprep.subr.mxu0 0.0
    %1591 = vmatpush1.msra.mxu0 0.0
    %1592 = vmatprep.mubr.f32.mxu0 0.0
    %v1593 = vand.u32 %v67, 4294901760
    %1594 = vmatmul.mubr.f32.gmra.mrb[0].mxu0 %v1593
    %v1595 = vpop.f32.mrb[0].mxu0
    %v1596 = vadd.f32 %v1471, %v1595
    %v1597 = vpop.f32.mrb[0].mxu0
    %v1598 = vadd.f32 %v1473, %v1597
    %1599 = vmatprep.mubr.f32.mxu0 0.0
    %v1600 = vand.u32 %v70, 4294901760
    %1601 = vmatmul.mubr.f32.gmra.mrb[0].mxu0 %v1600
    %v1602 = vpop.f32.mrb[0].mxu0
    %v1603 = vadd.f32 %v1482, %v1602
    %v1604 = vpop.f32.mrb[0].mxu0
    %v1605 = vadd.f32 %v1484, %v1604
    %1606 = vmatprep.mubr.f32.mxu0 0.0
    %v1607 = vand.u32 %v73, 4294901760
    %1608 = vmatmul.mubr.f32.gmra.mrb[0].mxu0 %v1607
    %v1609 = vpop.f32.mrb[0].mxu0
    %v1610 = vadd.f32 %v1493, %v1609
    %v1611 = vpop.f32.mrb[0].mxu0
    %v1612 = vadd.f32 %v1495, %v1611
    %1613 = vmatprep.mubr.f32.mxu0 0.0
    %v1614 = vand.u32 %v76, 4294901760
    %1615 = vmatmul.mubr.f32.gmra.mrb[0].mxu0 %v1614
    %v1616 = vpop.f32.mrb[0].mxu0
    %v1617 = vadd.f32 %v1504, %v1616
    %v1618 = vpop.f32.mrb[0].mxu0
    %v1619 = vadd.f32 %v1506, %v1618
    %1620 = vdwg.mxu0
    %v1621 = vand.u32 %v1388, 4294901760
    %v1622 = vsub.f32 %v1388, %v1621
    %1623 = vmatprep.subr.mxu0 %v1622
    %v1624 = vand.u32 %v1387, 4294901760
    %v1625 = vsub.f32 %v1387, %v1624
    %1626 = vmatpush1.msra.mxu0 %v1625
    %v1627 = vand.u32 %v1392, 4294901760
    %v1628 = vsub.f32 %v1392, %v1627
    %1629 = vmatprep.subr.mxu0 %v1628
    %v1630 = vand.u32 %v1391, 4294901760
    %v1631 = vsub.f32 %v1391, %v1630
    %1632 = vmatpush1.msra.mxu0 %v1631
    %1633 = vmatprep.subr.mxu0 0.0
    %1634 = vmatpush1.msra.mxu0 0.0
    %1635 = vmatprep.subr.mxu0 0.0
    %1636 = vmatpush1.msra.mxu0 0.0
    %1637 = vmatprep.subr.mxu0 0.0
    %1638 = vmatpush1.msra.mxu0 0.0
    %1639 = vmatprep.subr.mxu0 0.0
    %1640 = vmatpush1.msra.mxu0 0.0
    %1641 = vmatprep.subr.mxu0 0.0
    %1642 = vmatpush1.msra.mxu0 0.0
    %1643 = vmatprep.subr.mxu0 0.0
    %1644 = vmatpush1.msra.mxu0 0.0
    %1645 = vmatprep.subr.mxu0 0.0
    %1646 = vmatpush1.msra.mxu0 0.0
    %1647 = vmatprep.subr.mxu0 0.0
    %1648 = vmatpush1.msra.mxu0 0.0
    %1649 = vmatprep.subr.mxu0 0.0
    %1650 = vmatpush1.msra.mxu0 0.0
    %1651 = vmatprep.subr.mxu0 0.0
    %1652 = vmatpush1.msra.mxu0 0.0
    %1653 = vmatprep.subr.mxu0 0.0
    %1654 = vmatpush1.msra.mxu0 0.0
    %1655 = vmatprep.subr.mxu0 0.0
    %1656 = vmatpush1.msra.mxu0 0.0
    %1657 = vmatprep.subr.mxu0 0.0
    %1658 = vmatpush1.msra.mxu0 0.0
    %1659 = vmatprep.subr.mxu0 0.0
    %1660 = vmatpush1.msra.mxu0 0.0
    %1661 = vmatprep.subr.mxu0 0.0
    %1662 = vmatpush1.msra.mxu0 0.0
    %1663 = vmatprep.subr.mxu0 0.0
    %1664 = vmatpush1.msra.mxu0 0.0
    %1665 = vmatprep.subr.mxu0 0.0
    %1666 = vmatpush1.msra.mxu0 0.0
    %1667 = vmatprep.subr.mxu0 0.0
    %1668 = vmatpush1.msra.mxu0 0.0
    %1669 = vmatprep.subr.mxu0 0.0
    %1670 = vmatpush1.msra.mxu0 0.0
    %1671 = vmatprep.subr.mxu0 0.0
    %1672 = vmatpush1.msra.mxu0 0.0
    %1673 = vmatprep.subr.mxu0 0.0
    %1674 = vmatpush1.msra.mxu0 0.0
    %1675 = vmatprep.subr.mxu0 0.0
    %1676 = vmatpush1.msra.mxu0 0.0
    %1677 = vmatprep.subr.mxu0 0.0
    %1678 = vmatpush1.msra.mxu0 0.0
    %1679 = vmatprep.subr.mxu0 0.0
    %1680 = vmatpush1.msra.mxu0 0.0
    %1681 = vmatprep.subr.mxu0 0.0
    %1682 = vmatpush1.msra.mxu0 0.0
    %1683 = vmatprep.subr.mxu0 0.0
    %1684 = vmatpush1.msra.mxu0 0.0
    %1685 = vmatprep.subr.mxu0 0.0
    %1686 = vmatpush1.msra.mxu0 0.0
    %1687 = vmatprep.subr.mxu0 0.0
    %1688 = vmatpush1.msra.mxu0 0.0
    %1689 = vmatprep.subr.mxu0 0.0
    %1690 = vmatpush1.msra.mxu0 0.0
    %1691 = vmatprep.subr.mxu0 0.0
    %1692 = vmatpush1.msra.mxu0 0.0
    %1693 = vmatprep.mubr.f32.mxu0 0.0
    %v1694 = vand.u32 %v67, 4294901760
    %v1695 = vsub.f32 %v67, %v1694
    %1696 = vmatmul.mubr.f32.gmra.mrb[0].mxu0 %v1695
    %v1697 = vpop.f32.mrb[0].mxu0
    %v1698 = vadd.f32 %v1596, %v1697
    %v1699 = vpop.f32.mrb[0].mxu0
    %v1700 = vadd.f32 %v1598, %v1699
    %1701 = vmatprep.mubr.f32.mxu0 0.0
    %v1702 = vand.u32 %v70, 4294901760
    %v1703 = vsub.f32 %v70, %v1702
    %1704 = vmatmul.mubr.f32.gmra.mrb[0].mxu0 %v1703
    %v1705 = vpop.f32.mrb[0].mxu0
    %v1706 = vadd.f32 %v1603, %v1705
    %v1707 = vpop.f32.mrb[0].mxu0
    %v1708 = vadd.f32 %v1605, %v1707
    %1709 = vmatprep.mubr.f32.mxu0 0.0
    %v1710 = vand.u32 %v73, 4294901760
    %v1711 = vsub.f32 %v73, %v1710
    %1712 = vmatmul.mubr.f32.gmra.mrb[0].mxu0 %v1711
    %v1713 = vpop.f32.mrb[0].mxu0
    %v1714 = vadd.f32 %v1610, %v1713
    %v1715 = vpop.f32.mrb[0].mxu0
    %v1716 = vadd.f32 %v1612, %v1715
    %1717 = vmatprep.mubr.f32.mxu0 0.0
    %v1718 = vand.u32 %v76, 4294901760
    %v1719 = vsub.f32 %v76, %v1718
    %1720 = vmatmul.mubr.f32.gmra.mrb[0].mxu0 %v1719
    %v1721 = vpop.f32.mrb[0].mxu0
    %v1722 = vadd.f32 %v1617, %v1721
    %v1723 = vpop.f32.mrb[0].mxu0
    %v1724 = vadd.f32 %v1619, %v1723
    %1725 = vdwg.mxu0
    %v1726 = vand.u32 %v1388, 4294901760
    %1727 = vmatprep.subr.mxu0 %v1726
    %v1728 = vand.u32 %v1387, 4294901760
    %1729 = vmatpush1.msra.mxu0 %v1728
    %v1730 = vand.u32 %v1392, 4294901760
    %1731 = vmatprep.subr.mxu0 %v1730
    %v1732 = vand.u32 %v1391, 4294901760
    %1733 = vmatpush1.msra.mxu0 %v1732
    %1734 = vmatprep.subr.mxu0 0.0
    %1735 = vmatpush1.msra.mxu0 0.0
    %1736 = vmatprep.subr.mxu0 0.0
    %1737 = vmatpush1.msra.mxu0 0.0
    %1738 = vmatprep.subr.mxu0 0.0
    %1739 = vmatpush1.msra.mxu0 0.0
    %1740 = vmatprep.subr.mxu0 0.0
    %1741 = vmatpush1.msra.mxu0 0.0
    %1742 = vmatprep.subr.mxu0 0.0
    %1743 = vmatpush1.msra.mxu0 0.0
    %1744 = vmatprep.subr.mxu0 0.0
    %1745 = vmatpush1.msra.mxu0 0.0
    %1746 = vmatprep.subr.mxu0 0.0
    %1747 = vmatpush1.msra.mxu0 0.0
    %1748 = vmatprep.subr.mxu0 0.0
    %1749 = vmatpush1.msra.mxu0 0.0
    %1750 = vmatprep.subr.mxu0 0.0
    %1751 = vmatpush1.msra.mxu0 0.0
    %1752 = vmatprep.subr.mxu0 0.0
    %1753 = vmatpush1.msra.mxu0 0.0
    %1754 = vmatprep.subr.mxu0 0.0
    %1755 = vmatpush1.msra.mxu0 0.0
    %1756 = vmatprep.subr.mxu0 0.0
    %1757 = vmatpush1.msra.mxu0 0.0
    %1758 = vmatprep.subr.mxu0 0.0
    %1759 = vmatpush1.msra.mxu0 0.0
    %1760 = vmatprep.subr.mxu0 0.0
    %1761 = vmatpush1.msra.mxu0 0.0
    %1762 = vmatprep.subr.mxu0 0.0
    %1763 = vmatpush1.msra.mxu0 0.0
    %1764 = vmatprep.subr.mxu0 0.0
    %1765 = vmatpush1.msra.mxu0 0.0
    %1766 = vmatprep.subr.mxu0 0.0
    %1767 = vmatpush1.msra.mxu0 0.0
    %1768 = vmatprep.subr.mxu0 0.0
    %1769 = vmatpush1.msra.mxu0 0.0
    %1770 = vmatprep.subr.mxu0 0.0
    %1771 = vmatpush1.msra.mxu0 0.0
    %1772 = vmatprep.subr.mxu0 0.0
    %1773 = vmatpush1.msra.mxu0 0.0
    %1774 = vmatprep.subr.mxu0 0.0
    %1775 = vmatpush1.msra.mxu0 0.0
    %1776 = vmatprep.subr.mxu0 0.0
    %1777 = vmatpush1.msra.mxu0 0.0
    %1778 = vmatprep.subr.mxu0 0.0
    %1779 = vmatpush1.msra.mxu0 0.0
    %1780 = vmatprep.subr.mxu0 0.0
    %1781 = vmatpush1.msra.mxu0 0.0
    %1782 = vmatprep.subr.mxu0 0.0
    %1783 = vmatpush1.msra.mxu0 0.0
    %1784 = vmatprep.subr.mxu0 0.0
    %1785 = vmatpush1.msra.mxu0 0.0
    %1786 = vmatprep.subr.mxu0 0.0
    %1787 = vmatpush1.msra.mxu0 0.0
    %1788 = vmatprep.subr.mxu0 0.0
    %1789 = vmatpush1.msra.mxu0 0.0
    %1790 = vmatprep.subr.mxu0 0.0
    %1791 = vmatpush1.msra.mxu0 0.0
    %1792 = vmatprep.subr.mxu0 0.0
    %1793 = vmatpush1.msra.mxu0 0.0
    %1794 = vmatprep.mubr.f32.mxu0 0.0
    %v1795 = vand.u32 %v67, 4294901760
    %v1796 = vsub.f32 %v67, %v1795
    %v1797 = vand.u32 %v1796, 4294901760
    %1798 = vmatmul.mubr.f32.gmra.mrb[0].mxu0 %v1797
    %v1799 = vpop.f32.mrb[0].mxu0
    %v1800 = vadd.f32 %v1698, %v1799
    %v1801 = vpop.f32.mrb[0].mxu0
    %v1802 = vadd.f32 %v1700, %v1801
    %1803 = vmatprep.mubr.f32.mxu0 0.0
    %v1804 = vand.u32 %v70, 4294901760
    %v1805 = vsub.f32 %v70, %v1804
    %v1806 = vand.u32 %v1805, 4294901760
    %1807 = vmatmul.mubr.f32.gmra.mrb[0].mxu0 %v1806
    %v1808 = vpop.f32.mrb[0].mxu0
    %v1809 = vadd.f32 %v1706, %v1808
    %v1810 = vpop.f32.mrb[0].mxu0
    %v1811 = vadd.f32 %v1708, %v1810
    %1812 = vmatprep.mubr.f32.mxu0 0.0
    %v1813 = vand.u32 %v73, 4294901760
    %v1814 = vsub.f32 %v73, %v1813
    %v1815 = vand.u32 %v1814, 4294901760
    %1816 = vmatmul.mubr.f32.gmra.mrb[0].mxu0 %v1815
    %v1817 = vpop.f32.mrb[0].mxu0
    %v1818 = vadd.f32 %v1714, %v1817
    %v1819 = vpop.f32.mrb[0].mxu0
    %v1820 = vadd.f32 %v1716, %v1819
    %1821 = vmatprep.mubr.f32.mxu0 0.0
    %v1822 = vand.u32 %v76, 4294901760
    %v1823 = vsub.f32 %v76, %v1822
    %v1824 = vand.u32 %v1823, 4294901760
    %1825 = vmatmul.mubr.f32.gmra.mrb[0].mxu0 %v1824
    %v1826 = vpop.f32.mrb[0].mxu0
    %v1827 = vadd.f32 %v1722, %v1826
    %v1828 = vpop.f32.mrb[0].mxu0
    %v1829 = vadd.f32 %v1724, %v1828
    %1830 = vdwg.mxu0
    %v1831 = vand.u32 %v1388, 4294901760
    %v1832 = vsub.f32 %v1388, %v1831
    %v1833 = vand.u32 %v1832, 4294901760
    %1834 = vmatprep.subr.mxu0 %v1833
    %v1835 = vand.u32 %v1387, 4294901760
    %v1836 = vsub.f32 %v1387, %v1835
    %v1837 = vand.u32 %v1836, 4294901760
    %1838 = vmatpush1.msra.mxu0 %v1837
    %v1839 = vand.u32 %v1392, 4294901760
    %v1840 = vsub.f32 %v1392, %v1839
    %v1841 = vand.u32 %v1840, 4294901760
    %1842 = vmatprep.subr.mxu0 %v1841
    %v1843 = vand.u32 %v1391, 4294901760
    %v1844 = vsub.f32 %v1391, %v1843
    %v1845 = vand.u32 %v1844, 4294901760
    %1846 = vmatpush1.msra.mxu0 %v1845
    %1847 = vmatprep.subr.mxu0 0.0
    %1848 = vmatpush1.msra.mxu0 0.0
    %1849 = vmatprep.subr.mxu0 0.0
    %1850 = vmatpush1.msra.mxu0 0.0
    %1851 = vmatprep.subr.mxu0 0.0
    %1852 = vmatpush1.msra.mxu0 0.0
    %1853 = vmatprep.subr.mxu0 0.0
    %1854 = vmatpush1.msra.mxu0 0.0
    %1855 = vmatprep.subr.mxu0 0.0
    %1856 = vmatpush1.msra.mxu0 0.0
    %1857 = vmatprep.subr.mxu0 0.0
    %1858 = vmatpush1.msra.mxu0 0.0
    %1859 = vmatprep.subr.mxu0 0.0
    %1860 = vmatpush1.msra.mxu0 0.0
    %1861 = vmatprep.subr.mxu0 0.0
    %1862 = vmatpush1.msra.mxu0 0.0
    %1863 = vmatprep.subr.mxu0 0.0
    %1864 = vmatpush1.msra.mxu0 0.0
    %1865 = vmatprep.subr.mxu0 0.0
    %1866 = vmatpush1.msra.mxu0 0.0
    %1867 = vmatprep.subr.mxu0 0.0
    %1868 = vmatpush1.msra.mxu0 0.0
    %1869 = vmatprep.subr.mxu0 0.0
    %1870 = vmatpush1.msra.mxu0 0.0
    %1871 = vmatprep.subr.mxu0 0.0
    %1872 = vmatpush1.msra.mxu0 0.0
    %1873 = vmatprep.subr.mxu0 0.0
    %1874 = vmatpush1.msra.mxu0 0.0
    %1875 = vmatprep.subr.mxu0 0.0
    %1876 = vmatpush1.msra.mxu0 0.0
    %1877 = vmatprep.subr.mxu0 0.0
    %1878 = vmatpush1.msra.mxu0 0.0
    %1879 = vmatprep.subr.mxu0 0.0
    %1880 = vmatpush1.msra.mxu0 0.0
    %1881 = vmatprep.subr.mxu0 0.0
    %1882 = vmatpush1.msra.mxu0 0.0
    %1883 = vmatprep.subr.mxu0 0.0
    %1884 = vmatpush1.msra.mxu0 0.0
    %1885 = vmatprep.subr.mxu0 0.0
    %1886 = vmatpush1.msra.mxu0 0.0
    %1887 = vmatprep.subr.mxu0 0.0
    %1888 = vmatpush1.msra.mxu0 0.0
    %1889 = vmatprep.subr.mxu0 0.0
    %1890 = vmatpush1.msra.mxu0 0.0
    %1891 = vmatprep.subr.mxu0 0.0
    %1892 = vmatpush1.msra.mxu0 0.0
    %1893 = vmatprep.subr.mxu0 0.0
    %1894 = vmatpush1.msra.mxu0 0.0
    %1895 = vmatprep.subr.mxu0 0.0
    %1896 = vmatpush1.msra.mxu0 0.0
    %1897 = vmatprep.subr.mxu0 0.0
    %1898 = vmatpush1.msra.mxu0 0.0
    %1899 = vmatprep.subr.mxu0 0.0
    %1900 = vmatpush1.msra.mxu0 0.0
    %1901 = vmatprep.subr.mxu0 0.0
    %1902 = vmatpush1.msra.mxu0 0.0
    %1903 = vmatprep.subr.mxu0 0.0
    %1904 = vmatpush1.msra.mxu0 0.0
    %1905 = vmatprep.subr.mxu0 0.0
    %1906 = vmatpush1.msra.mxu0 0.0
    %1907 = vmatprep.mubr.f32.mxu0 0.0
    %v1908 = vand.u32 %v67, 4294901760
    %1909 = vmatmul.mubr.f32.gmra.mrb[0].mxu0 %v1908
    %v1910 = vpop.f32.mrb[0].mxu0
    %v1911 = vadd.f32 %v1800, %v1910
    %v1912 = vpop.f32.mrb[0].mxu0
    %v1913 = vadd.f32 %v1802, %v1912
    %1914 = vmatprep.mubr.f32.mxu0 0.0
    %v1915 = vand.u32 %v70, 4294901760
    %1916 = vmatmul.mubr.f32.gmra.mrb[0].mxu0 %v1915
    %v1917 = vpop.f32.mrb[0].mxu0
    %v1918 = vadd.f32 %v1809, %v1917
    %v1919 = vpop.f32.mrb[0].mxu0
    %v1920 = vadd.f32 %v1811, %v1919
    %1921 = vmatprep.mubr.f32.mxu0 0.0
    %v1922 = vand.u32 %v73, 4294901760
    %1923 = vmatmul.mubr.f32.gmra.mrb[0].mxu0 %v1922
    %v1924 = vpop.f32.mrb[0].mxu0
    %v1925 = vadd.f32 %v1818, %v1924
    %v1926 = vpop.f32.mrb[0].mxu0
    %v1927 = vadd.f32 %v1820, %v1926
    %1928 = vmatprep.mubr.f32.mxu0 0.0
    %v1929 = vand.u32 %v76, 4294901760
    %1930 = vmatmul.mubr.f32.gmra.mrb[0].mxu0 %v1929
    %v1931 = vpop.f32.mrb[0].mxu0
    %v1932 = vadd.f32 %v1827, %v1931
    %v1933 = vpop.f32.mrb[0].mxu0
    %v1934 = vadd.f32 %v1829, %v1933
    %1935 = vdwg.mxu0
    %v1936 = vand.u32 %v1388, 4294901760
    %1937 = vmatprep.subr.mxu0 %v1936
    %v1938 = vand.u32 %v1387, 4294901760
    %1939 = vmatpush1.msra.mxu0 %v1938
    %v1940 = vand.u32 %v1392, 4294901760
    %1941 = vmatprep.subr.mxu0 %v1940
    %v1942 = vand.u32 %v1391, 4294901760
    %1943 = vmatpush1.msra.mxu0 %v1942
    %1944 = vmatprep.subr.mxu0 0.0
    %1945 = vmatpush1.msra.mxu0 0.0
    %1946 = vmatprep.subr.mxu0 0.0
    %1947 = vmatpush1.msra.mxu0 0.0
    %1948 = vmatprep.subr.mxu0 0.0
    %1949 = vmatpush1.msra.mxu0 0.0
    %1950 = vmatprep.subr.mxu0 0.0
    %1951 = vmatpush1.msra.mxu0 0.0
    %1952 = vmatprep.subr.mxu0 0.0
    %1953 = vmatpush1.msra.mxu0 0.0
    %1954 = vmatprep.subr.mxu0 0.0
    %1955 = vmatpush1.msra.mxu0 0.0
    %1956 = vmatprep.subr.mxu0 0.0
    %1957 = vmatpush1.msra.mxu0 0.0
    %1958 = vmatprep.subr.mxu0 0.0
    %1959 = vmatpush1.msra.mxu0 0.0
    %1960 = vmatprep.subr.mxu0 0.0
    %1961 = vmatpush1.msra.mxu0 0.0
    %1962 = vmatprep.subr.mxu0 0.0
    %1963 = vmatpush1.msra.mxu0 0.0
    %1964 = vmatprep.subr.mxu0 0.0
    %1965 = vmatpush1.msra.mxu0 0.0
    %1966 = vmatprep.subr.mxu0 0.0
    %1967 = vmatpush1.msra.mxu0 0.0
    %1968 = vmatprep.subr.mxu0 0.0
    %1969 = vmatpush1.msra.mxu0 0.0
    %1970 = vmatprep.subr.mxu0 0.0
    %1971 = vmatpush1.msra.mxu0 0.0
    %1972 = vmatprep.subr.mxu0 0.0
    %1973 = vmatpush1.msra.mxu0 0.0
    %1974 = vmatprep.subr.mxu0 0.0
    %1975 = vmatpush1.msra.mxu0 0.0
    %1976 = vmatprep.subr.mxu0 0.0
    %1977 = vmatpush1.msra.mxu0 0.0
    %1978 = vmatprep.subr.mxu0 0.0
    %1979 = vmatpush1.msra.mxu0 0.0
    %1980 = vmatprep.subr.mxu0 0.0
    %1981 = vmatpush1.msra.mxu0 0.0
    %1982 = vmatprep.subr.mxu0 0.0
    %1983 = vmatpush1.msra.mxu0 0.0
    %1984 = vmatprep.subr.mxu0 0.0
    %1985 = vmatpush1.msra.mxu0 0.0
    %1986 = vmatprep.subr.mxu0 0.0
    %1987 = vmatpush1.msra.mxu0 0.0
    %1988 = vmatprep.subr.mxu0 0.0
    %1989 = vmatpush1.msra.mxu0 0.0
    %1990 = vmatprep.subr.mxu0 0.0
    %1991 = vmatpush1.msra.mxu0 0.0
    %1992 = vmatprep.subr.mxu0 0.0
    %1993 = vmatpush1.msra.mxu0 0.0
    %1994 = vmatprep.subr.mxu0 0.0
    %1995 = vmatpush1.msra.mxu0 0.0
    %1996 = vmatprep.subr.mxu0 0.0
    %1997 = vmatpush1.msra.mxu0 0.0
    %1998 = vmatprep.subr.mxu0 0.0
    %1999 = vmatpush1.msra.mxu0 0.0
    %2000 = vmatprep.subr.mxu0 0.0
    %2001 = vmatpush1.msra.mxu0 0.0
    %2002 = vmatprep.subr.mxu0 0.0
    %2003 = vmatpush1.msra.mxu0 0.0
    %2004 = vmatprep.mubr.f32.mxu0 0.0
    %v2005 = vand.u32 %v67, 4294901760
    %2006 = vmatmul.mubr.f32.gmra.mrb[0].mxu0 %v2005
    %v2007 = vpop.f32.mrb[0].mxu0
    %v2008 = vadd.f32 %v1911, %v2007
    %v2009 = vpop.f32.mrb[0].mxu0
    %v2010 = vadd.f32 %v1913, %v2009
    %2011 = vmatprep.mubr.f32.mxu0 0.0
    %v2012 = vand.u32 %v70, 4294901760
    %2013 = vmatmul.mubr.f32.gmra.mrb[0].mxu0 %v2012
    %v2014 = vpop.f32.mrb[0].mxu0
    %v2015 = vadd.f32 %v1918, %v2014
    %v2016 = vpop.f32.mrb[0].mxu0
    %v2017 = vadd.f32 %v1920, %v2016
    %2018 = vmatprep.mubr.f32.mxu0 0.0
    %v2019 = vand.u32 %v73, 4294901760
    %2020 = vmatmul.mubr.f32.gmra.mrb[0].mxu0 %v2019
    %v2021 = vpop.f32.mrb[0].mxu0
    %v2022 = vadd.f32 %v1925, %v2021
    %v2023 = vpop.f32.mrb[0].mxu0
    %v2024 = vadd.f32 %v1927, %v2023
    %2025 = vmatprep.mubr.f32.mxu0 0.0
    %v2026 = vand.u32 %v76, 4294901760
    %2027 = vmatmul.mubr.f32.gmra.mrb[0].mxu0 %v2026
    %v2028 = vpop.f32.mrb[0].mxu0
    %v2029 = vadd.f32 %v1932, %v2028
    %v2030 = vpop.f32.mrb[0].mxu0
    %v2031 = vadd.f32 %v1934, %v2030
    %2032 = vdwg.mxu0
    %v2033 = vand.u32 %v1390, 4294901760
    %2034 = vmatprep.subr.mxu0 %v2033
    %v2035 = vand.u32 %v1389, 4294901760
    %2036 = vmatpush1.msra.mxu0 %v2035
    %v2037 = vand.u32 %v1394, 4294901760
    %2038 = vmatprep.subr.mxu0 %v2037
    %v2039 = vand.u32 %v1393, 4294901760
    %2040 = vmatpush1.msra.mxu0 %v2039
    %2041 = vmatprep.subr.mxu0 0.0
    %2042 = vmatpush1.msra.mxu0 0.0
    %2043 = vmatprep.subr.mxu0 0.0
    %2044 = vmatpush1.msra.mxu0 0.0
    %2045 = vmatprep.subr.mxu0 0.0
    %2046 = vmatpush1.msra.mxu0 0.0
    %2047 = vmatprep.subr.mxu0 0.0
    %2048 = vmatpush1.msra.mxu0 0.0
    %2049 = vmatprep.subr.mxu0 0.0
    %2050 = vmatpush1.msra.mxu0 0.0
    %2051 = vmatprep.subr.mxu0 0.0
    %2052 = vmatpush1.msra.mxu0 0.0
    %2053 = vmatprep.subr.mxu0 0.0
    %2054 = vmatpush1.msra.mxu0 0.0
    %2055 = vmatprep.subr.mxu0 0.0
    %2056 = vmatpush1.msra.mxu0 0.0
    %2057 = vmatprep.subr.mxu0 0.0
    %2058 = vmatpush1.msra.mxu0 0.0
    %2059 = vmatprep.subr.mxu0 0.0
    %2060 = vmatpush1.msra.mxu0 0.0
    %2061 = vmatprep.subr.mxu0 0.0
    %2062 = vmatpush1.msra.mxu0 0.0
    %2063 = vmatprep.subr.mxu0 0.0
    %2064 = vmatpush1.msra.mxu0 0.0
    %2065 = vmatprep.subr.mxu0 0.0
    %2066 = vmatpush1.msra.mxu0 0.0
    %2067 = vmatprep.subr.mxu0 0.0
    %2068 = vmatpush1.msra.mxu0 0.0
    %2069 = vmatprep.subr.mxu0 0.0
    %2070 = vmatpush1.msra.mxu0 0.0
    %2071 = vmatprep.subr.mxu0 0.0
    %2072 = vmatpush1.msra.mxu0 0.0
    %2073 = vmatprep.subr.mxu0 0.0
    %2074 = vmatpush1.msra.mxu0 0.0
    %2075 = vmatprep.subr.mxu0 0.0
    %2076 = vmatpush1.msra.mxu0 0.0
    %2077 = vmatprep.subr.mxu0 0.0
    %2078 = vmatpush1.msra.mxu0 0.0
    %2079 = vmatprep.subr.mxu0 0.0
    %2080 = vmatpush1.msra.mxu0 0.0
    %2081 = vmatprep.subr.mxu0 0.0
    %2082 = vmatpush1.msra.mxu0 0.0
    %2083 = vmatprep.subr.mxu0 0.0
    %2084 = vmatpush1.msra.mxu0 0.0
    %2085 = vmatprep.subr.mxu0 0.0
    %2086 = vmatpush1.msra.mxu0 0.0
    %2087 = vmatprep.subr.mxu0 0.0
    %2088 = vmatpush1.msra.mxu0 0.0
    %2089 = vmatprep.subr.mxu0 0.0
    %2090 = vmatpush1.msra.mxu0 0.0
    %2091 = vmatprep.subr.mxu0 0.0
    %2092 = vmatpush1.msra.mxu0 0.0
    %2093 = vmatprep.subr.mxu0 0.0
    %2094 = vmatpush1.msra.mxu0 0.0
    %2095 = vmatprep.subr.mxu0 0.0
    %2096 = vmatpush1.msra.mxu0 0.0
    %2097 = vmatprep.subr.mxu0 0.0
    %2098 = vmatpush1.msra.mxu0 0.0
    %2099 = vmatprep.subr.mxu0 0.0
    %2100 = vmatpush1.msra.mxu0 0.0
    %2101 = vmatprep.mubr.f32.mxu0 0.0
    %v2102 = vand.u32 %v67, 4294901760
    %v2103 = vsub.f32 %v67, %v2102
    %v2104 = vand.u32 %v2103, 4294901760
    %v2105 = vsub.f32 %v2103, %v2104
    %v2106 = vand.u32 %v2105, 4294901760
    %2107 = vmatmul.mubr.f32.gmra.mrb[0].mxu0 %v2106
    %v2108 = vpop.f32.mrb[0].mxu0
    %v2109 = vadd.f32 %v48, %v2108
    %v2110 = vpop.f32.mrb[0].mxu0
    %v2111 = vadd.f32 %v48, %v2110
    %2112 = vmatprep.mubr.f32.mxu0 0.0
    %v2113 = vand.u32 %v70, 4294901760
    %v2114 = vsub.f32 %v70, %v2113
    %v2115 = vand.u32 %v2114, 4294901760
    %v2116 = vsub.f32 %v2114, %v2115
    %v2117 = vand.u32 %v2116, 4294901760
    %2118 = vmatmul.mubr.f32.gmra.mrb[0].mxu0 %v2117
    %v2119 = vpop.f32.mrb[0].mxu0
    %v2120 = vadd.f32 %v53, %v2119
    %v2121 = vpop.f32.mrb[0].mxu0
    %v2122 = vadd.f32 %v53, %v2121
    %2123 = vmatprep.mubr.f32.mxu0 0.0
    %v2124 = vand.u32 %v73, 4294901760
    %v2125 = vsub.f32 %v73, %v2124
    %v2126 = vand.u32 %v2125, 4294901760
    %v2127 = vsub.f32 %v2125, %v2126
    %v2128 = vand.u32 %v2127, 4294901760
    %2129 = vmatmul.mubr.f32.gmra.mrb[0].mxu0 %v2128
    %v2130 = vpop.f32.mrb[0].mxu0
    %v2131 = vadd.f32 %v58, %v2130
    %v2132 = vpop.f32.mrb[0].mxu0
    %v2133 = vadd.f32 %v58, %v2132
    %2134 = vmatprep.mubr.f32.mxu0 0.0
    %v2135 = vand.u32 %v76, 4294901760
    %v2136 = vsub.f32 %v76, %v2135
    %v2137 = vand.u32 %v2136, 4294901760
    %v2138 = vsub.f32 %v2136, %v2137
    %v2139 = vand.u32 %v2138, 4294901760
    %2140 = vmatmul.mubr.f32.gmra.mrb[0].mxu0 %v2139
    %v2141 = vpop.f32.mrb[0].mxu0
    %v2142 = vadd.f32 %v63, %v2141
    %v2143 = vpop.f32.mrb[0].mxu0
    %v2144 = vadd.f32 %v63, %v2143
    %2145 = vdwg.mxu0
    %v2146 = vand.u32 %v1390, 4294901760
    %v2147 = vsub.f32 %v1390, %v2146
    %v2148 = vand.u32 %v2147, 4294901760
    %v2149 = vsub.f32 %v2147, %v2148
    %v2150 = vand.u32 %v2149, 4294901760
    %2151 = vmatprep.subr.mxu0 %v2150
    %v2152 = vand.u32 %v1389, 4294901760
    %v2153 = vsub.f32 %v1389, %v2152
    %v2154 = vand.u32 %v2153, 4294901760
    %v2155 = vsub.f32 %v2153, %v2154
    %v2156 = vand.u32 %v2155, 4294901760
    %2157 = vmatpush1.msra.mxu0 %v2156
    %v2158 = vand.u32 %v1394, 4294901760
    %v2159 = vsub.f32 %v1394, %v2158
    %v2160 = vand.u32 %v2159, 4294901760
    %v2161 = vsub.f32 %v2159, %v2160
    %v2162 = vand.u32 %v2161, 4294901760
    %2163 = vmatprep.subr.mxu0 %v2162
    %v2164 = vand.u32 %v1393, 4294901760
    %v2165 = vsub.f32 %v1393, %v2164
    %v2166 = vand.u32 %v2165, 4294901760
    %v2167 = vsub.f32 %v2165, %v2166
    %v2168 = vand.u32 %v2167, 4294901760
    %2169 = vmatpush1.msra.mxu0 %v2168
    %2170 = vmatprep.subr.mxu0 0.0
    %2171 = vmatpush1.msra.mxu0 0.0
    %2172 = vmatprep.subr.mxu0 0.0
    %2173 = vmatpush1.msra.mxu0 0.0
    %2174 = vmatprep.subr.mxu0 0.0
    %2175 = vmatpush1.msra.mxu0 0.0
    %2176 = vmatprep.subr.mxu0 0.0
    %2177 = vmatpush1.msra.mxu0 0.0
    %2178 = vmatprep.subr.mxu0 0.0
    %2179 = vmatpush1.msra.mxu0 0.0
    %2180 = vmatprep.subr.mxu0 0.0
    %2181 = vmatpush1.msra.mxu0 0.0
    %2182 = vmatprep.subr.mxu0 0.0
    %2183 = vmatpush1.msra.mxu0 0.0
    %2184 = vmatprep.subr.mxu0 0.0
    %2185 = vmatpush1.msra.mxu0 0.0
    %2186 = vmatprep.subr.mxu0 0.0
    %2187 = vmatpush1.msra.mxu0 0.0
    %2188 = vmatprep.subr.mxu0 0.0
    %2189 = vmatpush1.msra.mxu0 0.0
    %2190 = vmatprep.subr.mxu0 0.0
    %2191 = vmatpush1.msra.mxu0 0.0
    %2192 = vmatprep.subr.mxu0 0.0
    %2193 = vmatpush1.msra.mxu0 0.0
    %2194 = vmatprep.subr.mxu0 0.0
    %2195 = vmatpush1.msra.mxu0 0.0
    %2196 = vmatprep.subr.mxu0 0.0
    %2197 = vmatpush1.msra.mxu0 0.0
    %2198 = vmatprep.subr.mxu0 0.0
    %2199 = vmatpush1.msra.mxu0 0.0
    %2200 = vmatprep.subr.mxu0 0.0
    %2201 = vmatpush1.msra.mxu0 0.0
    %2202 = vmatprep.subr.mxu0 0.0
    %2203 = vmatpush1.msra.mxu0 0.0
    %2204 = vmatprep.subr.mxu0 0.0
    %2205 = vmatpush1.msra.mxu0 0.0
    %2206 = vmatprep.subr.mxu0 0.0
    %2207 = vmatpush1.msra.mxu0 0.0
    %2208 = vmatprep.subr.mxu0 0.0
    %2209 = vmatpush1.msra.mxu0 0.0
    %2210 = vmatprep.subr.mxu0 0.0
    %2211 = vmatpush1.msra.mxu0 0.0
    %2212 = vmatprep.subr.mxu0 0.0
    %2213 = vmatpush1.msra.mxu0 0.0
    %2214 = vmatprep.subr.mxu0 0.0
    %2215 = vmatpush1.msra.mxu0 0.0
    %2216 = vmatprep.subr.mxu0 0.0
    %2217 = vmatpush1.msra.mxu0 0.0
    %2218 = vmatprep.subr.mxu0 0.0
    %2219 = vmatpush1.msra.mxu0 0.0
    %2220 = vmatprep.subr.mxu0 0.0
    %2221 = vmatpush1.msra.mxu0 0.0
    %2222 = vmatprep.subr.mxu0 0.0
    %2223 = vmatpush1.msra.mxu0 0.0
    %2224 = vmatprep.subr.mxu0 0.0
    %2225 = vmatpush1.msra.mxu0 0.0
    %2226 = vmatprep.subr.mxu0 0.0
    %2227 = vmatpush1.msra.mxu0 0.0
    %2228 = vmatprep.subr.mxu0 0.0
    %2229 = vmatpush1.msra.mxu0 0.0
    %2230 = vmatprep.mubr.f32.mxu0 0.0
    %v2231 = vand.u32 %v67, 4294901760
    %2232 = vmatmul.mubr.f32.gmra.mrb[0].mxu0 %v2231
    %v2233 = vpop.f32.mrb[0].mxu0
    %v2234 = vadd.f32 %v2109, %v2233
    %v2235 = vpop.f32.mrb[0].mxu0
    %v2236 = vadd.f32 %v2111, %v2235
    %2237 = vmatprep.mubr.f32.mxu0 0.0
    %v2238 = vand.u32 %v70, 4294901760
    %2239 = vmatmul.mubr.f32.gmra.mrb[0].mxu0 %v2238
    %v2240 = vpop.f32.mrb[0].mxu0
    %v2241 = vadd.f32 %v2120, %v2240
    %v2242 = vpop.f32.mrb[0].mxu0
    %v2243 = vadd.f32 %v2122, %v2242
    %2244 = vmatprep.mubr.f32.mxu0 0.0
    %v2245 = vand.u32 %v73, 4294901760
    %2246 = vmatmul.mubr.f32.gmra.mrb[0].mxu0 %v2245
    %v2247 = vpop.f32.mrb[0].mxu0
    %v2248 = vadd.f32 %v2131, %v2247
    %v2249 = vpop.f32.mrb[0].mxu0
    %v2250 = vadd.f32 %v2133, %v2249
    %2251 = vmatprep.mubr.f32.mxu0 0.0
    %v2252 = vand.u32 %v76, 4294901760
    %2253 = vmatmul.mubr.f32.gmra.mrb[0].mxu0 %v2252
    %v2254 = vpop.f32.mrb[0].mxu0
    %v2255 = vadd.f32 %v2142, %v2254
    %v2256 = vpop.f32.mrb[0].mxu0
    %v2257 = vadd.f32 %v2144, %v2256
    %2258 = vdwg.mxu0
    %v2259 = vand.u32 %v1390, 4294901760
    %v2260 = vsub.f32 %v1390, %v2259
    %2261 = vmatprep.subr.mxu0 %v2260
    %v2262 = vand.u32 %v1389, 4294901760
    %v2263 = vsub.f32 %v1389, %v2262
    %2264 = vmatpush1.msra.mxu0 %v2263
    %v2265 = vand.u32 %v1394, 4294901760
    %v2266 = vsub.f32 %v1394, %v2265
    %2267 = vmatprep.subr.mxu0 %v2266
    %v2268 = vand.u32 %v1393, 4294901760
    %v2269 = vsub.f32 %v1393, %v2268
    %2270 = vmatpush1.msra.mxu0 %v2269
    %2271 = vmatprep.subr.mxu0 0.0
    %2272 = vmatpush1.msra.mxu0 0.0
    %2273 = vmatprep.subr.mxu0 0.0
    %2274 = vmatpush1.msra.mxu0 0.0
    %2275 = vmatprep.subr.mxu0 0.0
    %2276 = vmatpush1.msra.mxu0 0.0
    %2277 = vmatprep.subr.mxu0 0.0
    %2278 = vmatpush1.msra.mxu0 0.0
    %2279 = vmatprep.subr.mxu0 0.0
    %2280 = vmatpush1.msra.mxu0 0.0
    %2281 = vmatprep.subr.mxu0 0.0
    %2282 = vmatpush1.msra.mxu0 0.0
    %2283 = vmatprep.subr.mxu0 0.0
    %2284 = vmatpush1.msra.mxu0 0.0
    %2285 = vmatprep.subr.mxu0 0.0
    %2286 = vmatpush1.msra.mxu0 0.0
    %2287 = vmatprep.subr.mxu0 0.0
    %2288 = vmatpush1.msra.mxu0 0.0
    %2289 = vmatprep.subr.mxu0 0.0
    %2290 = vmatpush1.msra.mxu0 0.0
    %2291 = vmatprep.subr.mxu0 0.0
    %2292 = vmatpush1.msra.mxu0 0.0
    %2293 = vmatprep.subr.mxu0 0.0
    %2294 = vmatpush1.msra.mxu0 0.0
    %2295 = vmatprep.subr.mxu0 0.0
    %2296 = vmatpush1.msra.mxu0 0.0
    %2297 = vmatprep.subr.mxu0 0.0
    %2298 = vmatpush1.msra.mxu0 0.0
    %2299 = vmatprep.subr.mxu0 0.0
    %2300 = vmatpush1.msra.mxu0 0.0
    %2301 = vmatprep.subr.mxu0 0.0
    %2302 = vmatpush1.msra.mxu0 0.0
    %2303 = vmatprep.subr.mxu0 0.0
    %2304 = vmatpush1.msra.mxu0 0.0
    %2305 = vmatprep.subr.mxu0 0.0
    %2306 = vmatpush1.msra.mxu0 0.0
    %2307 = vmatprep.subr.mxu0 0.0
    %2308 = vmatpush1.msra.mxu0 0.0
    %2309 = vmatprep.subr.mxu0 0.0
    %2310 = vmatpush1.msra.mxu0 0.0
    %2311 = vmatprep.subr.mxu0 0.0
    %2312 = vmatpush1.msra.mxu0 0.0
    %2313 = vmatprep.subr.mxu0 0.0
    %2314 = vmatpush1.msra.mxu0 0.0
    %2315 = vmatprep.subr.mxu0 0.0
    %2316 = vmatpush1.msra.mxu0 0.0
    %2317 = vmatprep.subr.mxu0 0.0
    %2318 = vmatpush1.msra.mxu0 0.0
    %2319 = vmatprep.subr.mxu0 0.0
    %2320 = vmatpush1.msra.mxu0 0.0
    %2321 = vmatprep.subr.mxu0 0.0
    %2322 = vmatpush1.msra.mxu0 0.0
    %2323 = vmatprep.subr.mxu0 0.0
    %2324 = vmatpush1.msra.mxu0 0.0
    %2325 = vmatprep.subr.mxu0 0.0
    %2326 = vmatpush1.msra.mxu0 0.0
    %2327 = vmatprep.subr.mxu0 0.0
    %2328 = vmatpush1.msra.mxu0 0.0
    %2329 = vmatprep.subr.mxu0 0.0
    %2330 = vmatpush1.msra.mxu0 0.0
    %2331 = vmatprep.mubr.f32.mxu0 0.0
    %v2332 = vand.u32 %v67, 4294901760
    %v2333 = vsub.f32 %v67, %v2332
    %2334 = vmatmul.mubr.f32.gmra.mrb[0].mxu0 %v2333
    %v2335 = vpop.f32.mrb[0].mxu0
    %v2336 = vadd.f32 %v2234, %v2335
    %v2337 = vpop.f32.mrb[0].mxu0
    %v2338 = vadd.f32 %v2236, %v2337
    %2339 = vmatprep.mubr.f32.mxu0 0.0
    %v2340 = vand.u32 %v70, 4294901760
    %v2341 = vsub.f32 %v70, %v2340
    %2342 = vmatmul.mubr.f32.gmra.mrb[0].mxu0 %v2341
    %v2343 = vpop.f32.mrb[0].mxu0
    %v2344 = vadd.f32 %v2241, %v2343
    %v2345 = vpop.f32.mrb[0].mxu0
    %v2346 = vadd.f32 %v2243, %v2345
    %2347 = vmatprep.mubr.f32.mxu0 0.0
    %v2348 = vand.u32 %v73, 4294901760
    %v2349 = vsub.f32 %v73, %v2348
    %2350 = vmatmul.mubr.f32.gmra.mrb[0].mxu0 %v2349
    %v2351 = vpop.f32.mrb[0].mxu0
    %v2352 = vadd.f32 %v2248, %v2351
    %v2353 = vpop.f32.mrb[0].mxu0
    %v2354 = vadd.f32 %v2250, %v2353
    %2355 = vmatprep.mubr.f32.mxu0 0.0
    %v2356 = vand.u32 %v76, 4294901760
    %v2357 = vsub.f32 %v76, %v2356
    %2358 = vmatmul.mubr.f32.gmra.mrb[0].mxu0 %v2357
    %v2359 = vpop.f32.mrb[0].mxu0
    %v2360 = vadd.f32 %v2255, %v2359
    %v2361 = vpop.f32.mrb[0].mxu0
    %v2362 = vadd.f32 %v2257, %v2361
    %2363 = vdwg.mxu0
    %v2364 = vand.u32 %v1390, 4294901760
    %2365 = vmatprep.subr.mxu0 %v2364
    %v2366 = vand.u32 %v1389, 4294901760
    %2367 = vmatpush1.msra.mxu0 %v2366
    %v2368 = vand.u32 %v1394, 4294901760
    %2369 = vmatprep.subr.mxu0 %v2368
    %v2370 = vand.u32 %v1393, 4294901760
    %2371 = vmatpush1.msra.mxu0 %v2370
    %2372 = vmatprep.subr.mxu0 0.0
    %2373 = vmatpush1.msra.mxu0 0.0
    %2374 = vmatprep.subr.mxu0 0.0
    %2375 = vmatpush1.msra.mxu0 0.0
    %2376 = vmatprep.subr.mxu0 0.0
    %2377 = vmatpush1.msra.mxu0 0.0
    %2378 = vmatprep.subr.mxu0 0.0
    %2379 = vmatpush1.msra.mxu0 0.0
    %2380 = vmatprep.subr.mxu0 0.0
    %2381 = vmatpush1.msra.mxu0 0.0
    %2382 = vmatprep.subr.mxu0 0.0
    %2383 = vmatpush1.msra.mxu0 0.0
    %2384 = vmatprep.subr.mxu0 0.0
    %2385 = vmatpush1.msra.mxu0 0.0
    %2386 = vmatprep.subr.mxu0 0.0
    %2387 = vmatpush1.msra.mxu0 0.0
    %2388 = vmatprep.subr.mxu0 0.0
    %2389 = vmatpush1.msra.mxu0 0.0
    %2390 = vmatprep.subr.mxu0 0.0
    %2391 = vmatpush1.msra.mxu0 0.0
    %2392 = vmatprep.subr.mxu0 0.0
    %2393 = vmatpush1.msra.mxu0 0.0
    %2394 = vmatprep.subr.mxu0 0.0
    %2395 = vmatpush1.msra.mxu0 0.0
    %2396 = vmatprep.subr.mxu0 0.0
    %2397 = vmatpush1.msra.mxu0 0.0
    %2398 = vmatprep.subr.mxu0 0.0
    %2399 = vmatpush1.msra.mxu0 0.0
    %2400 = vmatprep.subr.mxu0 0.0
    %2401 = vmatpush1.msra.mxu0 0.0
    %2402 = vmatprep.subr.mxu0 0.0
    %2403 = vmatpush1.msra.mxu0 0.0
    %2404 = vmatprep.subr.mxu0 0.0
    %2405 = vmatpush1.msra.mxu0 0.0
    %2406 = vmatprep.subr.mxu0 0.0
    %2407 = vmatpush1.msra.mxu0 0.0
    %2408 = vmatprep.subr.mxu0 0.0
    %2409 = vmatpush1.msra.mxu0 0.0
    %2410 = vmatprep.subr.mxu0 0.0
    %2411 = vmatpush1.msra.mxu0 0.0
    %2412 = vmatprep.subr.mxu0 0.0
    %2413 = vmatpush1.msra.mxu0 0.0
    %2414 = vmatprep.subr.mxu0 0.0
    %2415 = vmatpush1.msra.mxu0 0.0
    %2416 = vmatprep.subr.mxu0 0.0
    %2417 = vmatpush1.msra.mxu0 0.0
    %2418 = vmatprep.subr.mxu0 0.0
    %2419 = vmatpush1.msra.mxu0 0.0
    %2420 = vmatprep.subr.mxu0 0.0
    %2421 = vmatpush1.msra.mxu0 0.0
    %2422 = vmatprep.subr.mxu0 0.0
    %2423 = vmatpush1.msra.mxu0 0.0
    %2424 = vmatprep.subr.mxu0 0.0
    %2425 = vmatpush1.msra.mxu0 0.0
    %2426 = vmatprep.subr.mxu0 0.0
    %2427 = vmatpush1.msra.mxu0 0.0
    %2428 = vmatprep.subr.mxu0 0.0
    %2429 = vmatpush1.msra.mxu0 0.0
    %2430 = vmatprep.subr.mxu0 0.0
    %2431 = vmatpush1.msra.mxu0 0.0
    %2432 = vmatprep.mubr.f32.mxu0 0.0
    %v2433 = vand.u32 %v67, 4294901760
    %v2434 = vsub.f32 %v67, %v2433
    %v2435 = vand.u32 %v2434, 4294901760
    %2436 = vmatmul.mubr.f32.gmra.mrb[0].mxu0 %v2435
    %v2437 = vpop.f32.mrb[0].mxu0
    %v2438 = vadd.f32 %v2336, %v2437
    %v2439 = vpop.f32.mrb[0].mxu0
    %v2440 = vadd.f32 %v2338, %v2439
    %2441 = vmatprep.mubr.f32.mxu0 0.0
    %v2442 = vand.u32 %v70, 4294901760
    %v2443 = vsub.f32 %v70, %v2442
    %v2444 = vand.u32 %v2443, 4294901760
    %2445 = vmatmul.mubr.f32.gmra.mrb[0].mxu0 %v2444
    %v2446 = vpop.f32.mrb[0].mxu0
    %v2447 = vadd.f32 %v2344, %v2446
    %v2448 = vpop.f32.mrb[0].mxu0
    %v2449 = vadd.f32 %v2346, %v2448
    %2450 = vmatprep.mubr.f32.mxu0 0.0
    %v2451 = vand.u32 %v73, 4294901760
    %v2452 = vsub.f32 %v73, %v2451
    %v2453 = vand.u32 %v2452, 4294901760
    %2454 = vmatmul.mubr.f32.gmra.mrb[0].mxu0 %v2453
    %v2455 = vpop.f32.mrb[0].mxu0
    %v2456 = vadd.f32 %v2352, %v2455
    %v2457 = vpop.f32.mrb[0].mxu0
    %v2458 = vadd.f32 %v2354, %v2457
    %2459 = vmatprep.mubr.f32.mxu0 0.0
    %v2460 = vand.u32 %v76, 4294901760
    %v2461 = vsub.f32 %v76, %v2460
    %v2462 = vand.u32 %v2461, 4294901760
    %2463 = vmatmul.mubr.f32.gmra.mrb[0].mxu0 %v2462
    %v2464 = vpop.f32.mrb[0].mxu0
    %v2465 = vadd.f32 %v2360, %v2464
    %v2466 = vpop.f32.mrb[0].mxu0
    %v2467 = vadd.f32 %v2362, %v2466
    %2468 = vdwg.mxu0
    %v2469 = vand.u32 %v1390, 4294901760
    %v2470 = vsub.f32 %v1390, %v2469
    %v2471 = vand.u32 %v2470, 4294901760
    %2472 = vmatprep.subr.mxu0 %v2471
    %v2473 = vand.u32 %v1389, 4294901760
    %v2474 = vsub.f32 %v1389, %v2473
    %v2475 = vand.u32 %v2474, 4294901760
    %2476 = vmatpush1.msra.mxu0 %v2475
    %v2477 = vand.u32 %v1394, 4294901760
    %v2478 = vsub.f32 %v1394, %v2477
    %v2479 = vand.u32 %v2478, 4294901760
    %2480 = vmatprep.subr.mxu0 %v2479
    %v2481 = vand.u32 %v1393, 4294901760
    %v2482 = vsub.f32 %v1393, %v2481
    %v2483 = vand.u32 %v2482, 4294901760
    %2484 = vmatpush1.msra.mxu0 %v2483
    %2485 = vmatprep.subr.mxu0 0.0
    %2486 = vmatpush1.msra.mxu0 0.0
    %2487 = vmatprep.subr.mxu0 0.0
    %2488 = vmatpush1.msra.mxu0 0.0
    %2489 = vmatprep.subr.mxu0 0.0
    %2490 = vmatpush1.msra.mxu0 0.0
    %2491 = vmatprep.subr.mxu0 0.0
    %2492 = vmatpush1.msra.mxu0 0.0
    %2493 = vmatprep.subr.mxu0 0.0
    %2494 = vmatpush1.msra.mxu0 0.0
    %2495 = vmatprep.subr.mxu0 0.0
    %2496 = vmatpush1.msra.mxu0 0.0
    %2497 = vmatprep.subr.mxu0 0.0
    %2498 = vmatpush1.msra.mxu0 0.0
    %2499 = vmatprep.subr.mxu0 0.0
    %2500 = vmatpush1.msra.mxu0 0.0
    %2501 = vmatprep.subr.mxu0 0.0
    %2502 = vmatpush1.msra.mxu0 0.0
    %2503 = vmatprep.subr.mxu0 0.0
    %2504 = vmatpush1.msra.mxu0 0.0
    %2505 = vmatprep.subr.mxu0 0.0
    %2506 = vmatpush1.msra.mxu0 0.0
    %2507 = vmatprep.subr.mxu0 0.0
    %2508 = vmatpush1.msra.mxu0 0.0
    %2509 = vmatprep.subr.mxu0 0.0
    %2510 = vmatpush1.msra.mxu0 0.0
    %2511 = vmatprep.subr.mxu0 0.0
    %2512 = vmatpush1.msra.mxu0 0.0
    %2513 = vmatprep.subr.mxu0 0.0
    %2514 = vmatpush1.msra.mxu0 0.0
    %2515 = vmatprep.subr.mxu0 0.0
    %2516 = vmatpush1.msra.mxu0 0.0
    %2517 = vmatprep.subr.mxu0 0.0
    %2518 = vmatpush1.msra.mxu0 0.0
    %2519 = vmatprep.subr.mxu0 0.0
    %2520 = vmatpush1.msra.mxu0 0.0
    %2521 = vmatprep.subr.mxu0 0.0
    %2522 = vmatpush1.msra.mxu0 0.0
    %2523 = vmatprep.subr.mxu0 0.0
    %2524 = vmatpush1.msra.mxu0 0.0
    %2525 = vmatprep.subr.mxu0 0.0
    %2526 = vmatpush1.msra.mxu0 0.0
    %2527 = vmatprep.subr.mxu0 0.0
    %2528 = vmatpush1.msra.mxu0 0.0
    %2529 = vmatprep.subr.mxu0 0.0
    %2530 = vmatpush1.msra.mxu0 0.0
    %2531 = vmatprep.subr.mxu0 0.0
    %2532 = vmatpush1.msra.mxu0 0.0
    %2533 = vmatprep.subr.mxu0 0.0
    %2534 = vmatpush1.msra.mxu0 0.0
    %2535 = vmatprep.subr.mxu0 0.0
    %2536 = vmatpush1.msra.mxu0 0.0
    %2537 = vmatprep.subr.mxu0 0.0
    %2538 = vmatpush1.msra.mxu0 0.0
    %2539 = vmatprep.subr.mxu0 0.0
    %2540 = vmatpush1.msra.mxu0 0.0
    %2541 = vmatprep.subr.mxu0 0.0
    %2542 = vmatpush1.msra.mxu0 0.0
    %2543 = vmatprep.subr.mxu0 0.0
    %2544 = vmatpush1.msra.mxu0 0.0
    %2545 = vmatprep.mubr.f32.mxu0 0.0
    %v2546 = vand.u32 %v67, 4294901760
    %2547 = vmatmul.mubr.f32.gmra.mrb[0].mxu0 %v2546
    %v2548 = vpop.f32.mrb[0].mxu0
    %v2549 = vadd.f32 %v2438, %v2548
    %v2550 = vpop.f32.mrb[0].mxu0
    %v2551 = vadd.f32 %v2440, %v2550
    %2552 = vmatprep.mubr.f32.mxu0 0.0
    %v2553 = vand.u32 %v70, 4294901760
    %2554 = vmatmul.mubr.f32.gmra.mrb[0].mxu0 %v2553
    %v2555 = vpop.f32.mrb[0].mxu0
    %v2556 = vadd.f32 %v2447, %v2555
    %v2557 = vpop.f32.mrb[0].mxu0
    %v2558 = vadd.f32 %v2449, %v2557
    %2559 = vmatprep.mubr.f32.mxu0 0.0
    %v2560 = vand.u32 %v73, 4294901760
    %2561 = vmatmul.mubr.f32.gmra.mrb[0].mxu0 %v2560
    %v2562 = vpop.f32.mrb[0].mxu0
    %v2563 = vadd.f32 %v2456, %v2562
    %v2564 = vpop.f32.mrb[0].mxu0
    %v2565 = vadd.f32 %v2458, %v2564
    %2566 = vmatprep.mubr.f32.mxu0 0.0
    %v2567 = vand.u32 %v76, 4294901760
    %2568 = vmatmul.mubr.f32.gmra.mrb[0].mxu0 %v2567
    %v2569 = vpop.f32.mrb[0].mxu0
    %v2570 = vadd.f32 %v2465, %v2569
    %v2571 = vpop.f32.mrb[0].mxu0
    %v2572 = vadd.f32 %v2467, %v2571
    %2573 = vdwg.mxu0
    %v2574 = vand.u32 %v1390, 4294901760
    %2575 = vmatprep.subr.mxu0 %v2574
    %v2576 = vand.u32 %v1389, 4294901760
    %2577 = vmatpush1.msra.mxu0 %v2576
    %v2578 = vand.u32 %v1394, 4294901760
    %2579 = vmatprep.subr.mxu0 %v2578
    %v2580 = vand.u32 %v1393, 4294901760
    %2581 = vmatpush1.msra.mxu0 %v2580
    %2582 = vmatprep.subr.mxu0 0.0
    %2583 = vmatpush1.msra.mxu0 0.0
    %2584 = vmatprep.subr.mxu0 0.0
    %2585 = vmatpush1.msra.mxu0 0.0
    %2586 = vmatprep.subr.mxu0 0.0
    %2587 = vmatpush1.msra.mxu0 0.0
    %2588 = vmatprep.subr.mxu0 0.0
    %2589 = vmatpush1.msra.mxu0 0.0
    %2590 = vmatprep.subr.mxu0 0.0
    %2591 = vmatpush1.msra.mxu0 0.0
    %2592 = vmatprep.subr.mxu0 0.0
    %2593 = vmatpush1.msra.mxu0 0.0
    %2594 = vmatprep.subr.mxu0 0.0
    %2595 = vmatpush1.msra.mxu0 0.0
    %2596 = vmatprep.subr.mxu0 0.0
    %2597 = vmatpush1.msra.mxu0 0.0
    %2598 = vmatprep.subr.mxu0 0.0
    %2599 = vmatpush1.msra.mxu0 0.0
    %2600 = vmatprep.subr.mxu0 0.0
    %2601 = vmatpush1.msra.mxu0 0.0
    %2602 = vmatprep.subr.mxu0 0.0
    %2603 = vmatpush1.msra.mxu0 0.0
    %2604 = vmatprep.subr.mxu0 0.0
    %2605 = vmatpush1.msra.mxu0 0.0
    %2606 = vmatprep.subr.mxu0 0.0
    %2607 = vmatpush1.msra.mxu0 0.0
    %2608 = vmatprep.subr.mxu0 0.0
    %2609 = vmatpush1.msra.mxu0 0.0
    %2610 = vmatprep.subr.mxu0 0.0
    %2611 = vmatpush1.msra.mxu0 0.0
    %2612 = vmatprep.subr.mxu0 0.0
    %2613 = vmatpush1.msra.mxu0 0.0
    %2614 = vmatprep.subr.mxu0 0.0
    %2615 = vmatpush1.msra.mxu0 0.0
    %2616 = vmatprep.subr.mxu0 0.0
    %2617 = vmatpush1.msra.mxu0 0.0
    %2618 = vmatprep.subr.mxu0 0.0
    %2619 = vmatpush1.msra.mxu0 0.0
    %2620 = vmatprep.subr.mxu0 0.0
    %2621 = vmatpush1.msra.mxu0 0.0
    %2622 = vmatprep.subr.mxu0 0.0
    %2623 = vmatpush1.msra.mxu0 0.0
    %2624 = vmatprep.subr.mxu0 0.0
    %2625 = vmatpush1.msra.mxu0 0.0
    %2626 = vmatprep.subr.mxu0 0.0
    %2627 = vmatpush1.msra.mxu0 0.0
    %2628 = vmatprep.subr.mxu0 0.0
    %2629 = vmatpush1.msra.mxu0 0.0
    %2630 = vmatprep.subr.mxu0 0.0
    %2631 = vmatpush1.msra.mxu0 0.0
    %2632 = vmatprep.subr.mxu0 0.0
    %2633 = vmatpush1.msra.mxu0 0.0
    %2634 = vmatprep.subr.mxu0 0.0
    %2635 = vmatpush1.msra.mxu0 0.0
    %2636 = vmatprep.subr.mxu0 0.0
    %2637 = vmatpush1.msra.mxu0 0.0
    %2638 = vmatprep.subr.mxu0 0.0
    %2639 = vmatpush1.msra.mxu0 0.0
    %2640 = vmatprep.subr.mxu0 0.0
    %2641 = vmatpush1.msra.mxu0 0.0
    %2642 = vmatprep.mubr.f32.mxu0 0.0
    %v2643 = vand.u32 %v67, 4294901760
    %2644 = vmatmul.mubr.f32.gmra.mrb[0].mxu0 %v2643
    %v2645 = vpop.f32.mrb[0].mxu0
    %v2646 = vadd.f32 %v2549, %v2645
    %v2647 = vpop.f32.mrb[0].mxu0
    %v2648 = vadd.f32 %v2551, %v2647
    %2649 = vmatprep.mubr.f32.mxu0 0.0
    %v2650 = vand.u32 %v70, 4294901760
    %2651 = vmatmul.mubr.f32.gmra.mrb[0].mxu0 %v2650
    %v2652 = vpop.f32.mrb[0].mxu0
    %v2653 = vadd.f32 %v2556, %v2652
    %v2654 = vpop.f32.mrb[0].mxu0
    %v2655 = vadd.f32 %v2558, %v2654
    %2656 = vmatprep.mubr.f32.mxu0 0.0
    %v2657 = vand.u32 %v73, 4294901760
    %2658 = vmatmul.mubr.f32.gmra.mrb[0].mxu0 %v2657
    %v2659 = vpop.f32.mrb[0].mxu0
    %v2660 = vadd.f32 %v2563, %v2659
    %v2661 = vpop.f32.mrb[0].mxu0
    %v2662 = vadd.f32 %v2565, %v2661
    %2663 = vmatprep.mubr.f32.mxu0 0.0
    %v2664 = vand.u32 %v76, 4294901760
    %2665 = vmatmul.mubr.f32.gmra.mrb[0].mxu0 %v2664
    %v2666 = vpop.f32.mrb[0].mxu0
    %v2667 = vadd.f32 %v2570, %v2666
    %v2668 = vpop.f32.mrb[0].mxu0
    %v2669 = vadd.f32 %v2572, %v2668
    %2670 = vdwg.mxu0
    %v2671 = vmax.f32 %v2008, 0.0
    %v2672 = vmax.f32 %v2010, 0.0
    %v2673 = vmax.f32 %v2646, 0.0
    %v2674 = vmax.f32 %v2648, 0.0
    %v2675 = vmax.f32 %v2015, 0.0
    %v2676 = vmax.f32 %v2017, 0.0
    %v2677 = vmax.f32 %v2653, 0.0
    %v2678 = vmax.f32 %v2655, 0.0
    %v2679 = vmax.f32 %v2022, 0.0
    %v2680 = vmax.f32 %v2024, 0.0
    %v2681 = vmax.f32 %v2660, 0.0
    %v2682 = vmax.f32 %v2662, 0.0
    %v2683 = vmax.f32 %v2029, 0.0
    %v2684 = vmax.f32 %v2031, 0.0
    %v2685 = vmax.f32 %v2667, 0.0
    %v2686 = vmax.f32 %v2669, 0.0
    %s2687 = scalar_lea.vmem [#allocation5], 128
    %2688 = vst [vmem:[%s2687] sm:$0xff] %v2671
    %2689 = vst [vmem:[%s2687 + $0x8] sm:$0xff] %v2672
    %2690 = vst [vmem:[%s2687 + $0x10] sm:$0xff] %v2673
    %2691 = vst [vmem:[%s2687 + $0x18] sm:$0xff] %v2674
    %2692 = vst [vmem:[%s2687 + $0x20] sm:$0xff] %v2675
    %2693 = vst [vmem:[%s2687 + $0x28] sm:$0xff] %v2676
    %2694 = vst [vmem:[%s2687 + $0x30] sm:$0xff] %v2677
    %2695 = vst [vmem:[%s2687 + $0x38] sm:$0xff] %v2678
    %2696 = vst [vmem:[%s2687 + $0x40] sm:$0xff] %v2679
    %2697 = vst [vmem:[%s2687 + $0x48] sm:$0xff] %v2680
    %2698 = vst [vmem:[%s2687 + $0x50] sm:$0xff] %v2681
    %2699 = vst [vmem:[%s2687 + $0x58] sm:$0xff] %v2682
    %2700 = vst [vmem:[%s2687 + $0x60] sm:$0xff] %v2683
    %2701 = vst [vmem:[%s2687 + $0x68] sm:$0xff] %v2684
    %2702 = vst [vmem:[%s2687 + $0x70] sm:$0xff] %v2685
    %2703 = vst [vmem:[%s2687 + $0x78] sm:$0xff] %v2686
    // Predicated region
    $region18: #{tpu_custom_call.1} parent=1 // pred_check
      _
    $region19: #{tpu_custom_call.1} parent=1 // pred_check_branch
      %2705 = sbr.rel (0) target = $region21
    $region20: #{tpu_custom_call.1} parent=1 // pred_region
      %s2707 = ssub.s32 4096, 4096
      %2708 = vsyncadd [#allocation4], %s2707
      %s2709 = sshll.u32 [#allocation5], 4
      %s2710 = int_to_ptr.vmem [resolvable:$true] %s2709
      %2715 = dma.vmem_to_hbm [thread:$0]  %s2710, 4096, %s3, [#allocation4], 512, 512, 32
    $region21: #{tpu_custom_call.1} parent=1 // pred_fallthru
      _
    // Predicated region
    $region22: #{tpu_custom_call.1} parent=1 // pred_check
      _
    $region23: #{tpu_custom_call.1} parent=1 // pred_check_branch
      %2717 = sbr.rel (0) target = $region25
    $region24: #{tpu_custom_call.1} parent=1 // pred_region
      %2718 = dma.done [#allocation4], 4096
    $region25: #{tpu_custom_call.1} parent=1 // pred_fallthru
      _
    %2719 = vsyncpa [#allocation3], 1
    %2720 = vsyncpa [#allocation4], 1

</llo_original>
